<compile_context>
chip_gen: v7x
topology: tpu7x:2x2x1
jax: 0.10.0
libtpu: 0.0.40
codegen_flags: <defaults>
</compile_context>

<pallas_src>
import jax
import jax.numpy as jnp
from jax.experimental import pallas as pl
from jax.experimental.pallas import tpu as pltpu


def _cdiv(a, b):
    return (a + b - 1) // b


def _round_up(n, m):
    return _cdiv(n, m) * m


def mlp3_kernel(x_ref, w1t_ref, w2t_ref, w3t_ref, bp_ref, out_ref):
    """One batch tile of the fused 4-layer MLP.

    x_ref   : (TM, D)  f32   activation tile in natural (batch, feature) layout
    wXt_ref : (K, H)   bf16  pre-transposed weights (in, out) -> MXU-stationary operand
    bp_ref  : (8, C)   f32   row 0: b1, row 1: b2, row 2: b3, row 3: fc4 weight row,
                             [4, 0]: fc4 bias
    out_ref : (1, TM)  f32   lane-dense output row
    """
    h1 = w1t_ref.shape[1]
    h2 = w2t_ref.shape[1]
    h3 = w3t_ref.shape[1]

    # In-kernel bf16 cast (VPU work, hidden under the MXU) -- no wrapper-side pass.
    x = x_ref[...].astype(jnp.bfloat16)

    # fc1 + ReLU : (TM, D) @ (D, H1) -> (TM, H1); bias+ReLU+downcast fused.
    h = jnp.dot(x, w1t_ref[...], preferred_element_type=jnp.float32)
    h = jnp.maximum(h + bp_ref[0:1, 0:h1], 0.0).astype(jnp.bfloat16)

    # fc2 + ReLU : (TM, H1) @ (H1, H2) -> (TM, H2)
    h = jnp.dot(h, w2t_ref[...], preferred_element_type=jnp.float32)
    h = jnp.maximum(h + bp_ref[1:2, 0:h2], 0.0).astype(jnp.bfloat16)

    # fc3 + ReLU : (TM, H2) @ (H2, H3) -> (TM, H3), keep f32 for the VPU fc4.
    h = jnp.dot(h, w3t_ref[...], preferred_element_type=jnp.float32)
    h = jnp.maximum(h + bp_ref[2:3, 0:h3], 0.0)

    # fc4 (single output unit): VPU multiply by the fc4 weight row, then one small
    # XLU transpose + sublane reduction so the result lands lane-dense as (1, TM).
    hw = h * bp_ref[3:4, 0:h3]                         # (TM, H3)  VPU
    y = jnp.sum(hw.T, axis=0, keepdims=True)           # (1, TM)   XLU (idle slot)
    out_ref[...] = (y + bp_ref[4:5, 0:1]).astype(out_ref.dtype)


def dense_nn_3layers(x, params, *, tile_m=1024):
    """Forward pass matching PyTorch Dense_NN_3layers. x: (B, D) f32 -> (B, 1) f32."""
    w1, b1 = params["w1"], params["b1"]   # (H1, D), (H1,)
    w2, b2 = params["w2"], params["b2"]   # (H2, H1), (H2,)
    w3, b3 = params["w3"], params["b3"]   # (H3, H2), (H3,)
    w4, b4 = params["w4"], params["b4"]   # (1, H3), (1,)

    B, D = x.shape
    H1, H2, H3 = w1.shape[0], w2.shape[0], w3.shape[0]

    # Batch tile: a multiple of 512 (feeds every MXU per layer, keeps the (1, TM)
    # output store unmasked), as large as tile_m, but keep >= 2 grid steps whenever
    # there is enough work so both v7x TensorCores get tiles (near-free on 1-TC chips).
    units = max(1, _cdiv(B, 512))                  # work in 512-row units
    max_units = max(1, tile_m // 512)
    steps = max(_cdiv(units, max_units), 2 if units >= 2 else 1)
    TM = _cdiv(units, steps) * 512
    grid = _cdiv(B, TM)
    padded_B = grid * TM                           # only the output is padded

    # Weights pre-transposed to (in, out) bf16: MXU-stationary operand, VMEM-resident
    # across the grid (constant index_map). Tiny arrays -> negligible wrapper cost.
    w1t = w1.T.astype(jnp.bfloat16)
    w2t = w2.T.astype(jnp.bfloat16)
    w3t = w3.T.astype(jnp.bfloat16)

    # All tiny per-layer vectors packed into ONE f32 array (rows) -> single DMA.
    cols = _round_up(max(H1, H2, H3, 1), 128)
    bp = jnp.zeros((8, cols), jnp.float32)
    bp = bp.at[0, :H1].set(b1)
    bp = bp.at[1, :H2].set(b2)
    bp = bp.at[2, :H3].set(b3)
    bp = bp.at[3, :H3].set(w4[0, :])               # fc4 weight as a row
    bp = bp.at[4, 0].set(b4[0])                    # fc4 bias scalar

    def resident(a):                               # same block every grid step
        return pl.BlockSpec(a.shape, lambda i: (0,) * a.ndim)

    out_row = pl.pallas_call(
        mlp3_kernel,
        out_shape=jax.ShapeDtypeStruct((1, padded_B), jnp.float32),
        grid=(grid,),
        in_specs=[
            # x streamed per batch tile in natural layout; ragged last block is
            # clipped by Pallas (garbage rows stay row-independent, sliced off below).
            pl.BlockSpec((TM, D), lambda i: (i, 0)),
            resident(w1t), resident(w2t), resident(w3t), resident(bp),
        ],
        out_specs=pl.BlockSpec((1, TM), lambda i: (0, i)),   # lane-dense output row
        compiler_params=pltpu.CompilerParams(
            dimension_semantics=("parallel",)),              # 2x on v7x megacore
    )(x, w1t, w2t, w3t, bp)

    return out_row[0, :B].reshape(B, 1)


def init_params(key, net_params):
    """PyTorch-style nn.Linear init: W (out, in), uniform(-1/sqrt(fan_in), +)."""
    dims = list(net_params) + [1]   # [d_in, h1, h2, h3, 1]
    params = {}
    keys = jax.random.split(key, 2 * (len(dims) - 1))
    for i in range(len(dims) - 1):
        fan_in, fan_out = dims[i], dims[i + 1]
        bound = 1.0 / (fan_in ** 0.5)
        params[f"w{i+1}"] = jax.random.uniform(
            keys[2 * i], (fan_out, fan_in), minval=-bound, maxval=bound,
            dtype=jnp.float32)
        params[f"b{i+1}"] = jax.random.uniform(
            keys[2 * i + 1], (fan_out,), minval=-bound, maxval=bound,
            dtype=jnp.float32)
    return params


def _reference(x, params):
    h = x
    for i in range(1, 4):
        h = jnp.maximum(h @ params[f"w{i}"].T + params[f"b{i}"], 0.0)
    return h @ params["w4"].T + params["b4"]


if __name__ == "__main__":
    key = jax.random.PRNGKey(0)
    net_params = [32, 64, 64, 32]   # [in_dim, h1, h2, h3]; fc4 -> 1
    kx, kx2, kp = jax.random.split(key, 3)
    params = init_params(kp, net_params)

    fwd = jax.jit(dense_nn_3layers)

    # Small single-tile case (grid = 1).
    x = jax.random.normal(kx, (8, net_params[0]), dtype=jnp.float32)
    out = jax.block_until_ready(fwd(x, params))
    ref = _reference(x, params)
    assert out.shape == (8, 1)
    # Kernel feeds the MXU bf16 (f32 accumulate), so compare with bf16-level tolerance.
    assert jnp.allclose(out, ref, atol=3e-2, rtol=3e-2)

    # Ragged multi-tile case (grid = 2, last batch tile partially out of bounds).
    x2 = jax.random.normal(kx2, (600, net_params[0]), dtype=jnp.float32)
    out2 = jax.block_until_ready(fwd(x2, params))
    ref2 = _reference(x2, params)
    assert out2.shape == (600, 1)
    assert jnp.allclose(out2, ref2, atol=3e-2, rtol=3e-2)

    print("KERNEL_OK")
</pallas_src>

<mosaic_0001>
module attributes {stable_mosaic.version = 11 : i64} {
  func.func @mlp3_kernel(%arg0: i32, %arg1: memref<512x32xf32, #tpu.memory_space<vmem>>, %arg2: memref<32x64xbf16, #tpu.memory_space<vmem>>, %arg3: memref<64x64xbf16, #tpu.memory_space<vmem>>, %arg4: memref<64x32xbf16, #tpu.memory_space<vmem>>, %arg5: memref<8x128xf32, #tpu.memory_space<vmem>>, %arg6: memref<1x512xf32, #tpu.memory_space<vmem>>) attributes {dimension_semantics = [#tpu.dimension_semantics<parallel>], iteration_bounds = array<i64: 1>, scalar_prefetch = 0 : i64, scratch_operands = 0 : i64, tpu.core_type = #tpu.core_type<tc>, window_params = [{transform_indices = @transform_0, window_bounds = array<i64: 512, 32>}, {pipeline_mode = #tpu.pipeline_mode<synchronous>, transform_indices = @transform_1, window_bounds = array<i64: 32, 64>}, {pipeline_mode = #tpu.pipeline_mode<synchronous>, transform_indices = @transform_2, window_bounds = array<i64: 64, 64>}, {pipeline_mode = #tpu.pipeline_mode<synchronous>, transform_indices = @transform_3, window_bounds = array<i64: 64, 32>}, {pipeline_mode = #tpu.pipeline_mode<synchronous>, transform_indices = @transform_4, window_bounds = array<i64: 8, 128>}, {transform_indices = @transform_5, window_bounds = array<i64: 1, 512>}]} {
    %c0 = arith.constant 0 : index
    %c0_0 = arith.constant 0 : index
    %0 = vector.load %arg1[%c0, %c0_0] : memref<512x32xf32, #tpu.memory_space<vmem>>, vector<512x32xf32>
    %1 = arith.truncf %0 : vector<512x32xf32> to vector<512x32xbf16>
    %c0_1 = arith.constant 0 : index
    %c0_2 = arith.constant 0 : index
    %2 = vector.load %arg2[%c0_1, %c0_2] : memref<32x64xbf16, #tpu.memory_space<vmem>>, vector<32x64xbf16>
    %cst = arith.constant dense<0.000000e+00> : vector<512x64xf32>
    %3 = tpu.matmul %1, %2, %cst {dimension_numbers = #tpu.dot_dimension_numbers<[1], [0], [0], [1], [0, 0, 1, 1], [], []>} : vector<512x32xbf16>, vector<32x64xbf16>, vector<512x64xf32> -> vector<512x64xf32>
    %c0_3 = arith.constant 0 : index
    %c0_4 = arith.constant 0 : index
    %4 = vector.load %arg5[%c0_3, %c0_4] : memref<8x128xf32, #tpu.memory_space<vmem>>, vector<1x64xf32>
    %5 = vector.broadcast %4 : vector<1x64xf32> to vector<512x64xf32>
    %6 = arith.addf %3, %5 : vector<512x64xf32>
    %cst_5 = arith.constant 0.000000e+00 : f32
    %7 = vector.broadcast %cst_5 : f32 to vector<512x64xf32>
    %8 = arith.maximumf %6, %7 : vector<512x64xf32>
    %9 = arith.truncf %8 : vector<512x64xf32> to vector<512x64xbf16>
    %c0_6 = arith.constant 0 : index
    %c0_7 = arith.constant 0 : index
    %10 = vector.load %arg3[%c0_6, %c0_7] : memref<64x64xbf16, #tpu.memory_space<vmem>>, vector<64x64xbf16>
    %cst_8 = arith.constant dense<0.000000e+00> : vector<512x64xf32>
    %11 = tpu.matmul %9, %10, %cst_8 {dimension_numbers = #tpu.dot_dimension_numbers<[1], [0], [0], [1], [0, 0, 1, 1], [], []>} : vector<512x64xbf16>, vector<64x64xbf16>, vector<512x64xf32> -> vector<512x64xf32>
    %c1 = arith.constant 1 : index
    %c0_9 = arith.constant 0 : index
    %12 = vector.load %arg5[%c1, %c0_9] : memref<8x128xf32, #tpu.memory_space<vmem>>, vector<1x64xf32>
    %13 = vector.broadcast %12 : vector<1x64xf32> to vector<512x64xf32>
    %14 = arith.addf %11, %13 : vector<512x64xf32>
    %cst_10 = arith.constant 0.000000e+00 : f32
    %15 = vector.broadcast %cst_10 : f32 to vector<512x64xf32>
    %16 = arith.maximumf %14, %15 : vector<512x64xf32>
    %17 = arith.truncf %16 : vector<512x64xf32> to vector<512x64xbf16>
    %c0_11 = arith.constant 0 : index
    %c0_12 = arith.constant 0 : index
    %18 = vector.load %arg4[%c0_11, %c0_12] : memref<64x32xbf16, #tpu.memory_space<vmem>>, vector<64x32xbf16>
    %cst_13 = arith.constant dense<0.000000e+00> : vector<512x32xf32>
    %19 = tpu.matmul %17, %18, %cst_13 {dimension_numbers = #tpu.dot_dimension_numbers<[1], [0], [0], [1], [0, 0, 1, 1], [], []>} : vector<512x64xbf16>, vector<64x32xbf16>, vector<512x32xf32> -> vector<512x32xf32>
    %c2 = arith.constant 2 : index
    %c0_14 = arith.constant 0 : index
    %20 = vector.load %arg5[%c2, %c0_14] : memref<8x128xf32, #tpu.memory_space<vmem>>, vector<1x32xf32>
    %21 = vector.broadcast %20 : vector<1x32xf32> to vector<512x32xf32>
    %22 = arith.addf %19, %21 : vector<512x32xf32>
    %cst_15 = arith.constant 0.000000e+00 : f32
    %23 = vector.broadcast %cst_15 : f32 to vector<512x32xf32>
    %24 = arith.maximumf %22, %23 : vector<512x32xf32>
    %c3 = arith.constant 3 : index
    %c0_16 = arith.constant 0 : index
    %25 = vector.load %arg5[%c3, %c0_16] : memref<8x128xf32, #tpu.memory_space<vmem>>, vector<1x32xf32>
    %26 = vector.broadcast %25 : vector<1x32xf32> to vector<512x32xf32>
    %27 = arith.mulf %24, %26 : vector<512x32xf32>
    %28 = tpu.transpose %27, [1, 0] : vector<512x32xf32> -> vector<32x512xf32>
    %cst_17 = arith.constant dense<0.000000e+00> : vector<512xf32>
    %29 = vector.multi_reduction <add>, %28, %cst_17 [0] : vector<32x512xf32> to vector<512xf32>
    %30 = vector.shape_cast %29 : vector<512xf32> to vector<1x512xf32>
    %c4 = arith.constant 4 : index
    %c0_18 = arith.constant 0 : index
    %31 = vector.load %arg5[%c4, %c0_18] : memref<8x128xf32, #tpu.memory_space<vmem>>, vector<1x1xf32>
    %32 = vector.broadcast %31 : vector<1x1xf32> to vector<1x512xf32>
    %33 = arith.addf %30, %32 : vector<1x512xf32>
    %c0_19 = arith.constant 0 : index
    %c0_20 = arith.constant 0 : index
    %34 = vector.load %arg6[%c0_19, %c0_20] : memref<1x512xf32, #tpu.memory_space<vmem>>, vector<1x512xf32>
    tpu.vector_store %arg6[%c0_19, %c0_20], %33 {strides = array<i32>} : memref<1x512xf32, #tpu.memory_space<vmem>>, vector<1x512xf32>,
    return
  }
  func.func @transform_0(%arg0: i32) -> (i32, i32) {
    %c0_i32 = arith.constant 0 : i32
    %c0_i32_0 = arith.constant 0 : i32
    return %arg0, %c0_i32 : i32, i32
  }
  func.func @transform_1(%arg0: i32) -> (i32, i32) {
    %c0_i32 = arith.constant 0 : i32
    %c0_i32_0 = arith.constant 0 : i32
    %c0_i32_1 = arith.constant 0 : i32
    return %c0_i32, %c0_i32_0 : i32, i32
  }
  func.func @transform_2(%arg0: i32) -> (i32, i32) {
    %c0_i32 = arith.constant 0 : i32
    %c0_i32_0 = arith.constant 0 : i32
    %c0_i32_1 = arith.constant 0 : i32
    return %c0_i32, %c0_i32_0 : i32, i32
  }
  func.func @transform_3(%arg0: i32) -> (i32, i32) {
    %c0_i32 = arith.constant 0 : i32
    %c0_i32_0 = arith.constant 0 : i32
    %c0_i32_1 = arith.constant 0 : i32
    return %c0_i32, %c0_i32_0 : i32, i32
  }
  func.func @transform_4(%arg0: i32) -> (i32, i32) {
    %c0_i32 = arith.constant 0 : i32
    %c0_i32_0 = arith.constant 0 : i32
    %c0_i32_1 = arith.constant 0 : i32
    return %c0_i32, %c0_i32_0 : i32, i32
  }
  func.func @transform_5(%arg0: i32) -> (i32, i32) {
    %c0_i32 = arith.constant 0 : i32
    %c0_i32_0 = arith.constant 0 : i32
    return %c0_i32, %arg0 : i32, i32
  }
}

</mosaic_0001>

<llo_original>
// kernel: dense_nn_3layers.1
$region0: #{dense_nn_3layers.1}
  #allocation0 [shape = 'u32[]', space=smem, size = 0x4, offset = 0x4, fixed_abs, tag = 'smem constant byte address 0x4 - core index']
  #allocation1 [shape = 'u32[144,128]{1,0:T(1,128)}', space=vmem, size = 0x12000, scoped, tag = 'internal scratch']
  %s0 = inlined_call_operand.vmem [shape: f32[8,32], index: 0, kind: input, shape index: {}]
  %s1 = inlined_call_operand.vmem [shape: bf16[32,64], index: 1, kind: input, shape index: {}]
  %s2 = inlined_call_operand.vmem [shape: bf16[64,64], index: 2, kind: input, shape index: {}]
  %s3 = inlined_call_operand.vmem [shape: bf16[64,32], index: 3, kind: input, shape index: {}]
  %s4 = inlined_call_operand.vmem [shape: f32[8,128], index: 4, kind: input, shape index: {}]
  %s5 = inlined_call_operand.vmem [shape: f32[1,512], index: 5, kind: output, shape index: {}]
  %s6 = sld [smem:[#allocation0]]
  $region30: #{dense_nn_3layers.1} parent=0
    _
  %s8 = ssub.s32 1, %s6
  %s9 = scalar_select 0, %s8, %s6
  // Predicated region
  $region2: #{dense_nn_3layers.1} parent=0 // pred_check
    _
  $region3: #{dense_nn_3layers.1} parent=0 // pred_check_branch
    %11 = sbr.rel (0) target = $region5
  $region4: #{dense_nn_3layers.1} parent=0 // pred_region
    _
  $region5: #{dense_nn_3layers.1} parent=0 // pred_fallthru
    _
  // Predicated region
  $region6: #{dense_nn_3layers.1} parent=0 // pred_check
    _
  $region7: #{dense_nn_3layers.1} parent=0 // pred_check_branch
    %13 = sbr.rel (0) target = $region9
  $region8: #{dense_nn_3layers.1} parent=0 // pred_region
    _
  $region9: #{dense_nn_3layers.1} parent=0 // pred_fallthru
    _
  // Predicated region
  $region10: #{dense_nn_3layers.1} parent=0 // pred_check
    _
  $region11: #{dense_nn_3layers.1} parent=0 // pred_check_branch
    %15 = sbr.rel (0) target = $region13
  $region12: #{dense_nn_3layers.1} parent=0 // pred_region
    _
  $region13: #{dense_nn_3layers.1} parent=0 // pred_fallthru
    _
  // Predicated region
  $region14: #{dense_nn_3layers.1} parent=0 // pred_check
    _
  $region15: #{dense_nn_3layers.1} parent=0 // pred_check_branch
    %17 = sbr.rel (0) target = $region17
  $region16: #{dense_nn_3layers.1} parent=0 // pred_region
    _
  $region17: #{dense_nn_3layers.1} parent=0 // pred_fallthru
    _
  // Predicated region
  $region18: #{dense_nn_3layers.1} parent=0 // pred_check
    _
  $region19: #{dense_nn_3layers.1} parent=0 // pred_check_branch
    %19 = sbr.rel (0) target = $region21
  $region20: #{dense_nn_3layers.1} parent=0 // pred_region
    _
  $region21: #{dense_nn_3layers.1} parent=0 // pred_fallthru
    _
  %v21 = vld [vmem:[%s0] sm:$0xff]
  %v22 = vld [vmem:[%s0 + $0x8] sm:$0xff]
  %v23 = vld [vmem:[%s0 + $0x10] sm:$0xff]
  %v24 = vld [vmem:[%s0 + $0x18] sm:$0xff]
  %v25 = vld [vmem:[%s0 + $0x20] sm:$0xff]
  %v26 = vld [vmem:[%s0 + $0x28] sm:$0xff]
  %v27 = vld [vmem:[%s0 + $0x30] sm:$0xff]
  %v28 = vld [vmem:[%s0 + $0x38] sm:$0xff]
  %v29 = vld [vmem:[%s0 + $0x40] sm:$0xff]
  %v30 = vld [vmem:[%s0 + $0x48] sm:$0xff]
  %v31 = vld [vmem:[%s0 + $0x50] sm:$0xff]
  %v32 = vld [vmem:[%s0 + $0x58] sm:$0xff]
  %v33 = vld [vmem:[%s0 + $0x60] sm:$0xff]
  %v34 = vld [vmem:[%s0 + $0x68] sm:$0xff]
  %v35 = vld [vmem:[%s0 + $0x70] sm:$0xff]
  %v36 = vld [vmem:[%s0 + $0x78] sm:$0xff]
  %v37 = vld [vmem:[%s0 + $0x80] sm:$0xff]
  %v38 = vld [vmem:[%s0 + $0x88] sm:$0xff]
  %v39 = vld [vmem:[%s0 + $0x90] sm:$0xff]
  %v40 = vld [vmem:[%s0 + $0x98] sm:$0xff]
  %v41 = vld [vmem:[%s0 + $0xa0] sm:$0xff]
  %v42 = vld [vmem:[%s0 + $0xa8] sm:$0xff]
  %v43 = vld [vmem:[%s0 + $0xb0] sm:$0xff]
  %v44 = vld [vmem:[%s0 + $0xb8] sm:$0xff]
  %v45 = vld [vmem:[%s0 + $0xc0] sm:$0xff]
  %v46 = vld [vmem:[%s0 + $0xc8] sm:$0xff]
  %v47 = vld [vmem:[%s0 + $0xd0] sm:$0xff]
  %v48 = vld [vmem:[%s0 + $0xd8] sm:$0xff]
  %v49 = vld [vmem:[%s0 + $0xe0] sm:$0xff]
  %v50 = vld [vmem:[%s0 + $0xe8] sm:$0xff]
  %v51 = vld [vmem:[%s0 + $0xf0] sm:$0xff]
  %v52 = vld [vmem:[%s0 + $0xf8] sm:$0xff]
  %v53 = vld [vmem:[%s0 + $0x100] sm:$0xff]
  %v54 = vld [vmem:[%s0 + $0x108] sm:$0xff]
  %v55 = vld [vmem:[%s0 + $0x110] sm:$0xff]
  %v56 = vld [vmem:[%s0 + $0x118] sm:$0xff]
  %v57 = vld [vmem:[%s0 + $0x120] sm:$0xff]
  %v58 = vld [vmem:[%s0 + $0x128] sm:$0xff]
  %v59 = vld [vmem:[%s0 + $0x130] sm:$0xff]
  %v60 = vld [vmem:[%s0 + $0x138] sm:$0xff]
  %v61 = vld [vmem:[%s0 + $0x140] sm:$0xff]
  %v62 = vld [vmem:[%s0 + $0x148] sm:$0xff]
  %v63 = vld [vmem:[%s0 + $0x150] sm:$0xff]
  %v64 = vld [vmem:[%s0 + $0x158] sm:$0xff]
  %v65 = vld [vmem:[%s0 + $0x160] sm:$0xff]
  %v66 = vld [vmem:[%s0 + $0x168] sm:$0xff]
  %v67 = vld [vmem:[%s0 + $0x170] sm:$0xff]
  %v68 = vld [vmem:[%s0 + $0x178] sm:$0xff]
  %v69 = vld [vmem:[%s0 + $0x180] sm:$0xff]
  %v70 = vld [vmem:[%s0 + $0x188] sm:$0xff]
  %v71 = vld [vmem:[%s0 + $0x190] sm:$0xff]
  %v72 = vld [vmem:[%s0 + $0x198] sm:$0xff]
  %v73 = vld [vmem:[%s0 + $0x1a0] sm:$0xff]
  %v74 = vld [vmem:[%s0 + $0x1a8] sm:$0xff]
  %v75 = vld [vmem:[%s0 + $0x1b0] sm:$0xff]
  %v76 = vld [vmem:[%s0 + $0x1b8] sm:$0xff]
  %v77 = vld [vmem:[%s0 + $0x1c0] sm:$0xff]
  %v78 = vld [vmem:[%s0 + $0x1c8] sm:$0xff]
  %v79 = vld [vmem:[%s0 + $0x1d0] sm:$0xff]
  %v80 = vld [vmem:[%s0 + $0x1d8] sm:$0xff]
  %v81 = vld [vmem:[%s0 + $0x1e0] sm:$0xff]
  %v82 = vld [vmem:[%s0 + $0x1e8] sm:$0xff]
  %v83 = vld [vmem:[%s0 + $0x1f0] sm:$0xff]
  %v84 = vld [vmem:[%s0 + $0x1f8] sm:$0xff]
  %v85 = vpack.c.bf16 %v22, %v21
  %v86 = vpack.c.bf16 %v24, %v23
  %v87 = vpack.c.bf16 %v26, %v25
  %v88 = vpack.c.bf16 %v28, %v27
  %v89 = vpack.c.bf16 %v30, %v29
  %v90 = vpack.c.bf16 %v32, %v31
  %v91 = vpack.c.bf16 %v34, %v33
  %v92 = vpack.c.bf16 %v36, %v35
  %v93 = vpack.c.bf16 %v38, %v37
  %v94 = vpack.c.bf16 %v40, %v39
  %v95 = vpack.c.bf16 %v42, %v41
  %v96 = vpack.c.bf16 %v44, %v43
  %v97 = vpack.c.bf16 %v46, %v45
  %v98 = vpack.c.bf16 %v48, %v47
  %v99 = vpack.c.bf16 %v50, %v49
  %v100 = vpack.c.bf16 %v52, %v51
  %v101 = vpack.c.bf16 %v54, %v53
  %v102 = vpack.c.bf16 %v56, %v55
  %v103 = vpack.c.bf16 %v58, %v57
  %v104 = vpack.c.bf16 %v60, %v59
  %v105 = vpack.c.bf16 %v62, %v61
  %v106 = vpack.c.bf16 %v64, %v63
  %v107 = vpack.c.bf16 %v66, %v65
  %v108 = vpack.c.bf16 %v68, %v67
  %v109 = vpack.c.bf16 %v70, %v69
  %v110 = vpack.c.bf16 %v72, %v71
  %v111 = vpack.c.bf16 %v74, %v73
  %v112 = vpack.c.bf16 %v76, %v75
  %v113 = vpack.c.bf16 %v78, %v77
  %v114 = vpack.c.bf16 %v80, %v79
  %v115 = vpack.c.bf16 %v82, %v81
  %v116 = vpack.c.bf16 %v84, %v83
  %v117 = vld [vmem:[%s1] sm:$0xf]
  %v118 = vld [vmem:[%s1 + $0x4] sm:$0xf]
  %v119 = vld [vmem:[%s1 + $0x8] sm:$0xf]
  %v120 = vld [vmem:[%s1 + $0xc] sm:$0xf]
  %v121 = vld [vmem:[%s4] sm:$0x1]
  %v122 = vlaneseq
  %v123 = vshrl.u32 %v122, 7
  %v124 = vsub.s32 0, %v123
  %v125 = vrot.slane %v121, %v124
  %v130 = vunpack.c.l.b16 %v117
  %v131 = vunpack.c.l.b16 %v118
  %v132 = vunpack.c.l.b16 %v119
  %v133 = vunpack.c.l.b16 %v120
  %v134 = vpack.c.b16 %v131, %v130
  %v135 = vpack.c.b16 %v133, %v132
  %vm138 = vcmask 261120
  %v140 = vsel %vm138, %v85, 0
  %v143 = vsel %vm138, %v86, 0
  %v146 = vsel %vm138, %v87, 0
  %v149 = vsel %vm138, %v88, 0
  %v152 = vsel %vm138, %v89, 0
  %v155 = vsel %vm138, %v90, 0
  %v158 = vsel %vm138, %v91, 0
  %v161 = vsel %vm138, %v92, 0
  %v164 = vsel %vm138, %v93, 0
  %v167 = vsel %vm138, %v94, 0
  %v170 = vsel %vm138, %v95, 0
  %v173 = vsel %vm138, %v96, 0
  %v176 = vsel %vm138, %v97, 0
  %v179 = vsel %vm138, %v98, 0
  %v182 = vsel %vm138, %v99, 0
  %v185 = vsel %vm138, %v100, 0
  %v188 = vsel %vm138, %v101, 0
  %v191 = vsel %vm138, %v102, 0
  %v194 = vsel %vm138, %v103, 0
  %v197 = vsel %vm138, %v104, 0
  %v200 = vsel %vm138, %v105, 0
  %v203 = vsel %vm138, %v106, 0
  %v206 = vsel %vm138, %v107, 0
  %v209 = vsel %vm138, %v108, 0
  %v212 = vsel %vm138, %v109, 0
  %v215 = vsel %vm138, %v110, 0
  %v218 = vsel %vm138, %v111, 0
  %v221 = vsel %vm138, %v112, 0
  %v224 = vsel %vm138, %v113, 0
  %v227 = vsel %vm138, %v114, 0
  %v230 = vsel %vm138, %v115, 0
  %v233 = vsel %vm138, %v116, 0
  %235 = vmatprep.subr.bf16.mxu0 0
  %236 = vmatpush1.bf16.msra.mxu0 %v134
  %237 = vmatprep.subr.bf16.mxu0 0
  %238 = vmatpush1.bf16.msra.mxu0 %v135
  %239 = vmatprep.subr.bf16.mxu0 0
  %240 = vmatpush1.bf16.msra.mxu0 0
  %241 = vmatprep.subr.bf16.mxu0 0
  %242 = vmatpush1.bf16.msra.mxu0 0
  %243 = vmatprep.subr.bf16.mxu0 0
  %244 = vmatpush1.bf16.msra.mxu0 0
  %245 = vmatprep.subr.bf16.mxu0 0
  %246 = vmatpush1.bf16.msra.mxu0 0
  %247 = vmatprep.subr.bf16.mxu0 0
  %248 = vmatpush1.bf16.msra.mxu0 0
  %249 = vmatprep.subr.bf16.mxu0 0
  %250 = vmatpush1.bf16.msra.mxu0 0
  %251 = vmatprep.subr.bf16.mxu0 0
  %252 = vmatpush1.bf16.msra.mxu0 0
  %253 = vmatprep.subr.bf16.mxu0 0
  %254 = vmatpush1.bf16.msra.mxu0 0
  %255 = vmatprep.subr.bf16.mxu0 0
  %256 = vmatpush1.bf16.msra.mxu0 0
  %257 = vmatprep.subr.bf16.mxu0 0
  %258 = vmatpush1.bf16.msra.mxu0 0
  %259 = vmatprep.subr.bf16.mxu0 0
  %260 = vmatpush1.bf16.msra.mxu0 0
  %261 = vmatprep.subr.bf16.mxu0 0
  %262 = vmatpush1.bf16.msra.mxu0 0
  %263 = vmatprep.subr.bf16.mxu0 0
  %264 = vmatpush1.bf16.msra.mxu0 0
  %265 = vmatprep.subr.bf16.mxu0 0
  %266 = vmatpush1.bf16.msra.mxu0 0
  %267 = vmatprep.mubr.bf16.mxu0 0
  %268 = vmatmul.mubr.bf16.gmra.mrb[0].mxu0 %v140
  %v269 = vpop.f32.mrb[0].mxu0
  %v270 = vadd.f32 %v125, %v269
  %v271 = vpop.f32.mrb[0].mxu0
  %v272 = vpop.f32.mrb[0].mxu0
  %v273 = vadd.f32 %v125, %v272
  %v274 = vpop.f32.mrb[0].mxu0
  %275 = vmatprep.mubr.bf16.mxu0 0
  %276 = vmatmul.mubr.bf16.gmra.mrb[0].mxu0 %v143
  %v277 = vpop.f32.mrb[0].mxu0
  %v278 = vadd.f32 %v125, %v277
  %v279 = vpop.f32.mrb[0].mxu0
  %v280 = vpop.f32.mrb[0].mxu0
  %v281 = vadd.f32 %v125, %v280
  %v282 = vpop.f32.mrb[0].mxu0
  %283 = vmatprep.mubr.bf16.mxu0 0
  %284 = vmatmul.mubr.bf16.gmra.mrb[0].mxu0 %v146
  %v285 = vpop.f32.mrb[0].mxu0
  %v286 = vadd.f32 %v125, %v285
  %v287 = vpop.f32.mrb[0].mxu0
  %v288 = vpop.f32.mrb[0].mxu0
  %v289 = vadd.f32 %v125, %v288
  %v290 = vpop.f32.mrb[0].mxu0
  %291 = vmatprep.mubr.bf16.mxu0 0
  %292 = vmatmul.mubr.bf16.gmra.mrb[0].mxu0 %v149
  %v293 = vpop.f32.mrb[0].mxu0
  %v294 = vadd.f32 %v125, %v293
  %v295 = vpop.f32.mrb[0].mxu0
  %v296 = vpop.f32.mrb[0].mxu0
  %v297 = vadd.f32 %v125, %v296
  %v298 = vpop.f32.mrb[0].mxu0
  %299 = vmatprep.mubr.bf16.mxu0 0
  %300 = vmatmul.mubr.bf16.gmra.mrb[0].mxu0 %v152
  %v301 = vpop.f32.mrb[0].mxu0
  %v302 = vadd.f32 %v125, %v301
  %v303 = vpop.f32.mrb[0].mxu0
  %v304 = vpop.f32.mrb[0].mxu0
  %v305 = vadd.f32 %v125, %v304
  %v306 = vpop.f32.mrb[0].mxu0
  %307 = vmatprep.mubr.bf16.mxu0 0
  %308 = vmatmul.mubr.bf16.gmra.mrb[0].mxu0 %v155
  %v309 = vpop.f32.mrb[0].mxu0
  %v310 = vadd.f32 %v125, %v309
  %v311 = vpop.f32.mrb[0].mxu0
  %v312 = vpop.f32.mrb[0].mxu0
  %v313 = vadd.f32 %v125, %v312
  %v314 = vpop.f32.mrb[0].mxu0
  %315 = vmatprep.mubr.bf16.mxu0 0
  %316 = vmatmul.mubr.bf16.gmra.mrb[0].mxu0 %v158
  %v317 = vpop.f32.mrb[0].mxu0
  %v318 = vadd.f32 %v125, %v317
  %v319 = vpop.f32.mrb[0].mxu0
  %v320 = vpop.f32.mrb[0].mxu0
  %v321 = vadd.f32 %v125, %v320
  %v322 = vpop.f32.mrb[0].mxu0
  %323 = vmatprep.mubr.bf16.mxu0 0
  %324 = vmatmul.mubr.bf16.gmra.mrb[0].mxu0 %v161
  %v325 = vpop.f32.mrb[0].mxu0
  %v326 = vadd.f32 %v125, %v325
  %v327 = vpop.f32.mrb[0].mxu0
  %v328 = vpop.f32.mrb[0].mxu0
  %v329 = vadd.f32 %v125, %v328
  %v330 = vpop.f32.mrb[0].mxu0
  %331 = vmatprep.mubr.bf16.mxu0 0
  %332 = vmatmul.mubr.bf16.gmra.mrb[0].mxu0 %v164
  %v333 = vpop.f32.mrb[0].mxu0
  %v334 = vadd.f32 %v125, %v333
  %v335 = vpop.f32.mrb[0].mxu0
  %v336 = vpop.f32.mrb[0].mxu0
  %v337 = vadd.f32 %v125, %v336
  %v338 = vpop.f32.mrb[0].mxu0
  %339 = vmatprep.mubr.bf16.mxu0 0
  %340 = vmatmul.mubr.bf16.gmra.mrb[0].mxu0 %v167
  %v341 = vpop.f32.mrb[0].mxu0
  %v342 = vadd.f32 %v125, %v341
  %v343 = vpop.f32.mrb[0].mxu0
  %v344 = vpop.f32.mrb[0].mxu0
  %v345 = vadd.f32 %v125, %v344
  %v346 = vpop.f32.mrb[0].mxu0
  %347 = vmatprep.mubr.bf16.mxu0 0
  %348 = vmatmul.mubr.bf16.gmra.mrb[0].mxu0 %v170
  %v349 = vpop.f32.mrb[0].mxu0
  %v350 = vadd.f32 %v125, %v349
  %v351 = vpop.f32.mrb[0].mxu0
  %v352 = vpop.f32.mrb[0].mxu0
  %v353 = vadd.f32 %v125, %v352
  %v354 = vpop.f32.mrb[0].mxu0
  %355 = vmatprep.mubr.bf16.mxu0 0
  %356 = vmatmul.mubr.bf16.gmra.mrb[0].mxu0 %v173
  %v357 = vpop.f32.mrb[0].mxu0
  %v358 = vadd.f32 %v125, %v357
  %v359 = vpop.f32.mrb[0].mxu0
  %v360 = vpop.f32.mrb[0].mxu0
  %v361 = vadd.f32 %v125, %v360
  %v362 = vpop.f32.mrb[0].mxu0
  %363 = vmatprep.mubr.bf16.mxu0 0
  %364 = vmatmul.mubr.bf16.gmra.mrb[0].mxu0 %v176
  %v365 = vpop.f32.mrb[0].mxu0
  %v366 = vadd.f32 %v125, %v365
  %v367 = vpop.f32.mrb[0].mxu0
  %v368 = vpop.f32.mrb[0].mxu0
  %v369 = vadd.f32 %v125, %v368
  %v370 = vpop.f32.mrb[0].mxu0
  %371 = vmatprep.mubr.bf16.mxu0 0
  %372 = vmatmul.mubr.bf16.gmra.mrb[0].mxu0 %v179
  %v373 = vpop.f32.mrb[0].mxu0
  %v374 = vadd.f32 %v125, %v373
  %v375 = vpop.f32.mrb[0].mxu0
  %v376 = vpop.f32.mrb[0].mxu0
  %v377 = vadd.f32 %v125, %v376
  %v378 = vpop.f32.mrb[0].mxu0
  %379 = vmatprep.mubr.bf16.mxu0 0
  %380 = vmatmul.mubr.bf16.gmra.mrb[0].mxu0 %v182
  %v381 = vpop.f32.mrb[0].mxu0
  %v382 = vadd.f32 %v125, %v381
  %v383 = vpop.f32.mrb[0].mxu0
  %v384 = vpop.f32.mrb[0].mxu0
  %v385 = vadd.f32 %v125, %v384
  %v386 = vpop.f32.mrb[0].mxu0
  %387 = vmatprep.mubr.bf16.mxu0 0
  %388 = vmatmul.mubr.bf16.gmra.mrb[0].mxu0 %v185
  %v389 = vpop.f32.mrb[0].mxu0
  %v390 = vadd.f32 %v125, %v389
  %v391 = vpop.f32.mrb[0].mxu0
  %v392 = vpop.f32.mrb[0].mxu0
  %v393 = vadd.f32 %v125, %v392
  %v394 = vpop.f32.mrb[0].mxu0
  %395 = vmatprep.mubr.bf16.mxu0 0
  %396 = vmatmul.mubr.bf16.gmra.mrb[0].mxu0 %v188
  %v397 = vpop.f32.mrb[0].mxu0
  %v398 = vadd.f32 %v125, %v397
  %v399 = vpop.f32.mrb[0].mxu0
  %v400 = vpop.f32.mrb[0].mxu0
  %v401 = vadd.f32 %v125, %v400
  %v402 = vpop.f32.mrb[0].mxu0
  %403 = vmatprep.mubr.bf16.mxu0 0
  %404 = vmatmul.mubr.bf16.gmra.mrb[0].mxu0 %v191
  %v405 = vpop.f32.mrb[0].mxu0
  %v406 = vadd.f32 %v125, %v405
  %v407 = vpop.f32.mrb[0].mxu0
  %v408 = vpop.f32.mrb[0].mxu0
  %v409 = vadd.f32 %v125, %v408
  %v410 = vpop.f32.mrb[0].mxu0
  %411 = vmatprep.mubr.bf16.mxu0 0
  %412 = vmatmul.mubr.bf16.gmra.mrb[0].mxu0 %v194
  %v413 = vpop.f32.mrb[0].mxu0
  %v414 = vadd.f32 %v125, %v413
  %v415 = vpop.f32.mrb[0].mxu0
  %v416 = vpop.f32.mrb[0].mxu0
  %v417 = vadd.f32 %v125, %v416
  %v418 = vpop.f32.mrb[0].mxu0
  %419 = vmatprep.mubr.bf16.mxu0 0
  %420 = vmatmul.mubr.bf16.gmra.mrb[0].mxu0 %v197
  %v421 = vpop.f32.mrb[0].mxu0
  %v422 = vadd.f32 %v125, %v421
  %v423 = vpop.f32.mrb[0].mxu0
  %v424 = vpop.f32.mrb[0].mxu0
  %v425 = vadd.f32 %v125, %v424
  %v426 = vpop.f32.mrb[0].mxu0
  %427 = vmatprep.mubr.bf16.mxu0 0
  %428 = vmatmul.mubr.bf16.gmra.mrb[0].mxu0 %v200
  %v429 = vpop.f32.mrb[0].mxu0
  %v430 = vadd.f32 %v125, %v429
  %v431 = vpop.f32.mrb[0].mxu0
  %v432 = vpop.f32.mrb[0].mxu0
  %v433 = vadd.f32 %v125, %v432
  %v434 = vpop.f32.mrb[0].mxu0
  %435 = vmatprep.mubr.bf16.mxu0 0
  %436 = vmatmul.mubr.bf16.gmra.mrb[0].mxu0 %v203
  %v437 = vpop.f32.mrb[0].mxu0
  %v438 = vadd.f32 %v125, %v437
  %v439 = vpop.f32.mrb[0].mxu0
  %v440 = vpop.f32.mrb[0].mxu0
  %v441 = vadd.f32 %v125, %v440
  %v442 = vpop.f32.mrb[0].mxu0
  %443 = vmatprep.mubr.bf16.mxu0 0
  %444 = vmatmul.mubr.bf16.gmra.mrb[0].mxu0 %v206
  %v445 = vpop.f32.mrb[0].mxu0
  %v446 = vadd.f32 %v125, %v445
  %v447 = vpop.f32.mrb[0].mxu0
  %v448 = vpop.f32.mrb[0].mxu0
  %v449 = vadd.f32 %v125, %v448
  %v450 = vpop.f32.mrb[0].mxu0
  %451 = vmatprep.mubr.bf16.mxu0 0
  %452 = vmatmul.mubr.bf16.gmra.mrb[0].mxu0 %v209
  %v453 = vpop.f32.mrb[0].mxu0
  %v454 = vadd.f32 %v125, %v453
  %v455 = vpop.f32.mrb[0].mxu0
  %v456 = vpop.f32.mrb[0].mxu0
  %v457 = vadd.f32 %v125, %v456
  %v458 = vpop.f32.mrb[0].mxu0
  %459 = vmatprep.mubr.bf16.mxu0 0
  %460 = vmatmul.mubr.bf16.gmra.mrb[0].mxu0 %v212
  %v461 = vpop.f32.mrb[0].mxu0
  %v462 = vadd.f32 %v125, %v461
  %v463 = vpop.f32.mrb[0].mxu0
  %v464 = vpop.f32.mrb[0].mxu0
  %v465 = vadd.f32 %v125, %v464
  %v466 = vpop.f32.mrb[0].mxu0
  %467 = vmatprep.mubr.bf16.mxu0 0
  %468 = vmatmul.mubr.bf16.gmra.mrb[0].mxu0 %v215
  %v469 = vpop.f32.mrb[0].mxu0
  %v470 = vadd.f32 %v125, %v469
  %v471 = vpop.f32.mrb[0].mxu0
  %v472 = vpop.f32.mrb[0].mxu0
  %v473 = vadd.f32 %v125, %v472
  %v474 = vpop.f32.mrb[0].mxu0
  %475 = vmatprep.mubr.bf16.mxu0 0
  %476 = vmatmul.mubr.bf16.gmra.mrb[0].mxu0 %v218
  %v477 = vpop.f32.mrb[0].mxu0
  %v478 = vadd.f32 %v125, %v477
  %v479 = vpop.f32.mrb[0].mxu0
  %v480 = vpop.f32.mrb[0].mxu0
  %v481 = vadd.f32 %v125, %v480
  %v482 = vpop.f32.mrb[0].mxu0
  %483 = vmatprep.mubr.bf16.mxu0 0
  %484 = vmatmul.mubr.bf16.gmra.mrb[0].mxu0 %v221
  %v485 = vpop.f32.mrb[0].mxu0
  %v486 = vadd.f32 %v125, %v485
  %v487 = vpop.f32.mrb[0].mxu0
  %v488 = vpop.f32.mrb[0].mxu0
  %v489 = vadd.f32 %v125, %v488
  %v490 = vpop.f32.mrb[0].mxu0
  %491 = vmatprep.mubr.bf16.mxu0 0
  %492 = vmatmul.mubr.bf16.gmra.mrb[0].mxu0 %v224
  %v493 = vpop.f32.mrb[0].mxu0
  %v494 = vadd.f32 %v125, %v493
  %v495 = vpop.f32.mrb[0].mxu0
  %v496 = vpop.f32.mrb[0].mxu0
  %v497 = vadd.f32 %v125, %v496
  %v498 = vpop.f32.mrb[0].mxu0
  %499 = vmatprep.mubr.bf16.mxu0 0
  %500 = vmatmul.mubr.bf16.gmra.mrb[0].mxu0 %v227
  %v501 = vpop.f32.mrb[0].mxu0
  %v502 = vadd.f32 %v125, %v501
  %v503 = vpop.f32.mrb[0].mxu0
  %v504 = vpop.f32.mrb[0].mxu0
  %v505 = vadd.f32 %v125, %v504
  %v506 = vpop.f32.mrb[0].mxu0
  %507 = vmatprep.mubr.bf16.mxu0 0
  %508 = vmatmul.mubr.bf16.gmra.mrb[0].mxu0 %v230
  %v509 = vpop.f32.mrb[0].mxu0
  %v510 = vadd.f32 %v125, %v509
  %v511 = vpop.f32.mrb[0].mxu0
  %v512 = vpop.f32.mrb[0].mxu0
  %v513 = vadd.f32 %v125, %v512
  %v514 = vpop.f32.mrb[0].mxu0
  %515 = vmatprep.mubr.bf16.mxu0 0
  %516 = vmatmul.mubr.bf16.gmra.mrb[0].mxu0 %v233
  %v517 = vpop.f32.mrb[0].mxu0
  %v518 = vadd.f32 %v125, %v517
  %v519 = vpop.f32.mrb[0].mxu0
  %v520 = vpop.f32.mrb[0].mxu0
  %v521 = vadd.f32 %v125, %v520
  %v522 = vpop.f32.mrb[0].mxu0
  %523 = vdwg.mxu0
  %v524 = vmax.f32 %v270, 0.0
  %v525 = vmax.f32 %v273, 0.0
  %v526 = vmax.f32 %v278, 0.0
  %v527 = vmax.f32 %v281, 0.0
  %v528 = vmax.f32 %v286, 0.0
  %v529 = vmax.f32 %v289, 0.0
  %v530 = vmax.f32 %v294, 0.0
  %v531 = vmax.f32 %v297, 0.0
  %v532 = vmax.f32 %v302, 0.0
  %v533 = vmax.f32 %v305, 0.0
  %v534 = vmax.f32 %v310, 0.0
  %v535 = vmax.f32 %v313, 0.0
  %v536 = vmax.f32 %v318, 0.0
  %v537 = vmax.f32 %v321, 0.0
  %v538 = vmax.f32 %v326, 0.0
  %v539 = vmax.f32 %v329, 0.0
  %v540 = vmax.f32 %v334, 0.0
  %v541 = vmax.f32 %v337, 0.0
  %v542 = vmax.f32 %v342, 0.0
  %v543 = vmax.f32 %v345, 0.0
  %v544 = vmax.f32 %v350, 0.0
  %v545 = vmax.f32 %v353, 0.0
  %v546 = vmax.f32 %v358, 0.0
  %v547 = vmax.f32 %v361, 0.0
  %v548 = vmax.f32 %v366, 0.0
  %v549 = vmax.f32 %v369, 0.0
  %v550 = vmax.f32 %v374, 0.0
  %v551 = vmax.f32 %v377, 0.0
  %v552 = vmax.f32 %v382, 0.0
  %v553 = vmax.f32 %v385, 0.0
  %v554 = vmax.f32 %v390, 0.0
  %v555 = vmax.f32 %v393, 0.0
  %v556 = vmax.f32 %v398, 0.0
  %v557 = vmax.f32 %v401, 0.0
  %v558 = vmax.f32 %v406, 0.0
  %v559 = vmax.f32 %v409, 0.0
  %v560 = vmax.f32 %v414, 0.0
  %v561 = vmax.f32 %v417, 0.0
  %v562 = vmax.f32 %v422, 0.0
  %v563 = vmax.f32 %v425, 0.0
  %v564 = vmax.f32 %v430, 0.0
  %v565 = vmax.f32 %v433, 0.0
  %v566 = vmax.f32 %v438, 0.0
  %v567 = vmax.f32 %v441, 0.0
  %v568 = vmax.f32 %v446, 0.0
  %v569 = vmax.f32 %v449, 0.0
  %v570 = vmax.f32 %v454, 0.0
  %v571 = vmax.f32 %v457, 0.0
  %v572 = vmax.f32 %v462, 0.0
  %v573 = vmax.f32 %v465, 0.0
  %v574 = vmax.f32 %v470, 0.0
  %v575 = vmax.f32 %v473, 0.0
  %v576 = vmax.f32 %v478, 0.0
  %v577 = vmax.f32 %v481, 0.0
  %v578 = vmax.f32 %v486, 0.0
  %v579 = vmax.f32 %v489, 0.0
  %v580 = vmax.f32 %v494, 0.0
  %v581 = vmax.f32 %v497, 0.0
  %v582 = vmax.f32 %v502, 0.0
  %v583 = vmax.f32 %v505, 0.0
  %v584 = vmax.f32 %v510, 0.0
  %v585 = vmax.f32 %v513, 0.0
  %v586 = vmax.f32 %v518, 0.0
  %v587 = vmax.f32 %v521, 0.0
  %v588 = vpack.c.bf16 %v525, %v524
  %v589 = vpack.c.bf16 %v527, %v526
  %v590 = vpack.c.bf16 %v529, %v528
  %v591 = vpack.c.bf16 %v531, %v530
  %v592 = vpack.c.bf16 %v533, %v532
  %v593 = vpack.c.bf16 %v535, %v534
  %v594 = vpack.c.bf16 %v537, %v536
  %v595 = vpack.c.bf16 %v539, %v538
  %v596 = vpack.c.bf16 %v541, %v540
  %v597 = vpack.c.bf16 %v543, %v542
  %v598 = vpack.c.bf16 %v545, %v544
  %v599 = vpack.c.bf16 %v547, %v546
  %v600 = vpack.c.bf16 %v549, %v548
  %v601 = vpack.c.bf16 %v551, %v550
  %v602 = vpack.c.bf16 %v553, %v552
  %v603 = vpack.c.bf16 %v555, %v554
  %v604 = vpack.c.bf16 %v557, %v556
  %v605 = vpack.c.bf16 %v559, %v558
  %v606 = vpack.c.bf16 %v561, %v560
  %v607 = vpack.c.bf16 %v563, %v562
  %v608 = vpack.c.bf16 %v565, %v564
  %v609 = vpack.c.bf16 %v567, %v566
  %v610 = vpack.c.bf16 %v569, %v568
  %v611 = vpack.c.bf16 %v571, %v570
  %v612 = vpack.c.bf16 %v573, %v572
  %v613 = vpack.c.bf16 %v575, %v574
  %v614 = vpack.c.bf16 %v577, %v576
  %v615 = vpack.c.bf16 %v579, %v578
  %v616 = vpack.c.bf16 %v581, %v580
  %v617 = vpack.c.bf16 %v583, %v582
  %v618 = vpack.c.bf16 %v585, %v584
  %v619 = vpack.c.bf16 %v587, %v586
  %v620 = vld [vmem:[%s2] sm:$0xf]
  %v621 = vld [vmem:[%s2 + $0x4] sm:$0xf]
  %v622 = vld [vmem:[%s2 + $0x8] sm:$0xf]
  %v623 = vld [vmem:[%s2 + $0xc] sm:$0xf]
  %v624 = vld [vmem:[%s2 + $0x10] sm:$0xf]
  %v625 = vld [vmem:[%s2 + $0x14] sm:$0xf]
  %v626 = vld [vmem:[%s2 + $0x18] sm:$0xf]
  %v627 = vld [vmem:[%s2 + $0x1c] sm:$0xf]
  %v628 = vld [vmem:[%s4 + $0x1] sm:$0x1]
  %v629 = vlaneseq
  %v630 = vshrl.u32 %v629, 7
  %v631 = vsub.s32 0, %v630
  %v632 = vrot.slane %v628, %v631
  %v641 = vunpack.c.l.b16 %v620
  %v642 = vunpack.c.l.b16 %v621
  %v643 = vunpack.c.l.b16 %v622
  %v644 = vunpack.c.l.b16 %v623
  %v645 = vunpack.c.l.b16 %v624
  %v646 = vunpack.c.l.b16 %v625
  %v647 = vunpack.c.l.b16 %v626
  %v648 = vunpack.c.l.b16 %v627
  %v649 = vpack.c.b16 %v642, %v641
  %v650 = vpack.c.b16 %v644, %v643
  %v651 = vpack.c.b16 %v646, %v645
  %v652 = vpack.c.b16 %v648, %v647
  %vm657 = vcmask 523264
  %v659 = vsel %vm657, %v588, 0
  %v662 = vsel %vm657, %v589, 0
  %v665 = vsel %vm657, %v590, 0
  %v668 = vsel %vm657, %v591, 0
  %v671 = vsel %vm657, %v592, 0
  %v674 = vsel %vm657, %v593, 0
  %v677 = vsel %vm657, %v594, 0
  %v680 = vsel %vm657, %v595, 0
  %v683 = vsel %vm657, %v596, 0
  %v686 = vsel %vm657, %v597, 0
  %v689 = vsel %vm657, %v598, 0
  %v692 = vsel %vm657, %v599, 0
  %v695 = vsel %vm657, %v600, 0
  %v698 = vsel %vm657, %v601, 0
  %v701 = vsel %vm657, %v602, 0
  %v704 = vsel %vm657, %v603, 0
  %v707 = vsel %vm657, %v604, 0
  %v710 = vsel %vm657, %v605, 0
  %v713 = vsel %vm657, %v606, 0
  %v716 = vsel %vm657, %v607, 0
  %v719 = vsel %vm657, %v608, 0
  %v722 = vsel %vm657, %v609, 0
  %v725 = vsel %vm657, %v610, 0
  %v728 = vsel %vm657, %v611, 0
  %v731 = vsel %vm657, %v612, 0
  %v734 = vsel %vm657, %v613, 0
  %v737 = vsel %vm657, %v614, 0
  %v740 = vsel %vm657, %v615, 0
  %v743 = vsel %vm657, %v616, 0
  %v746 = vsel %vm657, %v617, 0
  %v749 = vsel %vm657, %v618, 0
  %v752 = vsel %vm657, %v619, 0
  %754 = vmatprep.subr.bf16.mxu0 0
  %755 = vmatpush1.bf16.msra.mxu0 %v649
  %756 = vmatprep.subr.bf16.mxu0 0
  %757 = vmatpush1.bf16.msra.mxu0 %v650
  %758 = vmatprep.subr.bf16.mxu0 0
  %759 = vmatpush1.bf16.msra.mxu0 %v651
  %760 = vmatprep.subr.bf16.mxu0 0
  %761 = vmatpush1.bf16.msra.mxu0 %v652
  %762 = vmatprep.subr.bf16.mxu0 0
  %763 = vmatpush1.bf16.msra.mxu0 0
  %764 = vmatprep.subr.bf16.mxu0 0
  %765 = vmatpush1.bf16.msra.mxu0 0
  %766 = vmatprep.subr.bf16.mxu0 0
  %767 = vmatpush1.bf16.msra.mxu0 0
  %768 = vmatprep.subr.bf16.mxu0 0
  %769 = vmatpush1.bf16.msra.mxu0 0
  %770 = vmatprep.subr.bf16.mxu0 0
  %771 = vmatpush1.bf16.msra.mxu0 0
  %772 = vmatprep.subr.bf16.mxu0 0
  %773 = vmatpush1.bf16.msra.mxu0 0
  %774 = vmatprep.subr.bf16.mxu0 0
  %775 = vmatpush1.bf16.msra.mxu0 0
  %776 = vmatprep.subr.bf16.mxu0 0
  %777 = vmatpush1.bf16.msra.mxu0 0
  %778 = vmatprep.subr.bf16.mxu0 0
  %779 = vmatpush1.bf16.msra.mxu0 0
  %780 = vmatprep.subr.bf16.mxu0 0
  %781 = vmatpush1.bf16.msra.mxu0 0
  %782 = vmatprep.subr.bf16.mxu0 0
  %783 = vmatpush1.bf16.msra.mxu0 0
  %784 = vmatprep.subr.bf16.mxu0 0
  %785 = vmatpush1.bf16.msra.mxu0 0
  %786 = vmatprep.mubr.bf16.mxu0 0
  %787 = vmatmul.mubr.bf16.gmra.mrb[0].mxu0 %v659
  %v788 = vpop.f32.mrb[0].mxu0
  %v789 = vadd.f32 %v632, %v788
  %v790 = vpop.f32.mrb[0].mxu0
  %v791 = vpop.f32.mrb[0].mxu0
  %v792 = vadd.f32 %v632, %v791
  %v793 = vpop.f32.mrb[0].mxu0
  %794 = vmatprep.mubr.bf16.mxu0 0
  %795 = vmatmul.mubr.bf16.gmra.mrb[0].mxu0 %v662
  %v796 = vpop.f32.mrb[0].mxu0
  %v797 = vadd.f32 %v632, %v796
  %v798 = vpop.f32.mrb[0].mxu0
  %v799 = vpop.f32.mrb[0].mxu0
  %v800 = vadd.f32 %v632, %v799
  %v801 = vpop.f32.mrb[0].mxu0
  %802 = vmatprep.mubr.bf16.mxu0 0
  %803 = vmatmul.mubr.bf16.gmra.mrb[0].mxu0 %v665
  %v804 = vpop.f32.mrb[0].mxu0
  %v805 = vadd.f32 %v632, %v804
  %v806 = vpop.f32.mrb[0].mxu0
  %v807 = vpop.f32.mrb[0].mxu0
  %v808 = vadd.f32 %v632, %v807
  %v809 = vpop.f32.mrb[0].mxu0
  %810 = vmatprep.mubr.bf16.mxu0 0
  %811 = vmatmul.mubr.bf16.gmra.mrb[0].mxu0 %v668
  %v812 = vpop.f32.mrb[0].mxu0
  %v813 = vadd.f32 %v632, %v812
  %v814 = vpop.f32.mrb[0].mxu0
  %v815 = vpop.f32.mrb[0].mxu0
  %v816 = vadd.f32 %v632, %v815
  %v817 = vpop.f32.mrb[0].mxu0
  %818 = vmatprep.mubr.bf16.mxu0 0
  %819 = vmatmul.mubr.bf16.gmra.mrb[0].mxu0 %v671
  %v820 = vpop.f32.mrb[0].mxu0
  %v821 = vadd.f32 %v632, %v820
  %v822 = vpop.f32.mrb[0].mxu0
  %v823 = vpop.f32.mrb[0].mxu0
  %v824 = vadd.f32 %v632, %v823
  %v825 = vpop.f32.mrb[0].mxu0
  %826 = vmatprep.mubr.bf16.mxu0 0
  %827 = vmatmul.mubr.bf16.gmra.mrb[0].mxu0 %v674
  %v828 = vpop.f32.mrb[0].mxu0
  %v829 = vadd.f32 %v632, %v828
  %v830 = vpop.f32.mrb[0].mxu0
  %v831 = vpop.f32.mrb[0].mxu0
  %v832 = vadd.f32 %v632, %v831
  %v833 = vpop.f32.mrb[0].mxu0
  %834 = vmatprep.mubr.bf16.mxu0 0
  %835 = vmatmul.mubr.bf16.gmra.mrb[0].mxu0 %v677
  %v836 = vpop.f32.mrb[0].mxu0
  %v837 = vadd.f32 %v632, %v836
  %v838 = vpop.f32.mrb[0].mxu0
  %v839 = vpop.f32.mrb[0].mxu0
  %v840 = vadd.f32 %v632, %v839
  %v841 = vpop.f32.mrb[0].mxu0
  %842 = vmatprep.mubr.bf16.mxu0 0
  %843 = vmatmul.mubr.bf16.gmra.mrb[0].mxu0 %v680
  %v844 = vpop.f32.mrb[0].mxu0
  %v845 = vadd.f32 %v632, %v844
  %v846 = vpop.f32.mrb[0].mxu0
  %v847 = vpop.f32.mrb[0].mxu0
  %v848 = vadd.f32 %v632, %v847
  %v849 = vpop.f32.mrb[0].mxu0
  %850 = vmatprep.mubr.bf16.mxu0 0
  %851 = vmatmul.mubr.bf16.gmra.mrb[0].mxu0 %v683
  %v852 = vpop.f32.mrb[0].mxu0
  %v853 = vadd.f32 %v632, %v852
  %v854 = vpop.f32.mrb[0].mxu0
  %v855 = vpop.f32.mrb[0].mxu0
  %v856 = vadd.f32 %v632, %v855
  %v857 = vpop.f32.mrb[0].mxu0
  %858 = vmatprep.mubr.bf16.mxu0 0
  %859 = vmatmul.mubr.bf16.gmra.mrb[0].mxu0 %v686
  %v860 = vpop.f32.mrb[0].mxu0
  %v861 = vadd.f32 %v632, %v860
  %v862 = vpop.f32.mrb[0].mxu0
  %v863 = vpop.f32.mrb[0].mxu0
  %v864 = vadd.f32 %v632, %v863
  %v865 = vpop.f32.mrb[0].mxu0
  %866 = vmatprep.mubr.bf16.mxu0 0
  %867 = vmatmul.mubr.bf16.gmra.mrb[0].mxu0 %v689
  %v868 = vpop.f32.mrb[0].mxu0
  %v869 = vadd.f32 %v632, %v868
  %v870 = vpop.f32.mrb[0].mxu0
  %v871 = vpop.f32.mrb[0].mxu0
  %v872 = vadd.f32 %v632, %v871
  %v873 = vpop.f32.mrb[0].mxu0
  %874 = vmatprep.mubr.bf16.mxu0 0
  %875 = vmatmul.mubr.bf16.gmra.mrb[0].mxu0 %v692
  %v876 = vpop.f32.mrb[0].mxu0
  %v877 = vadd.f32 %v632, %v876
  %v878 = vpop.f32.mrb[0].mxu0
  %v879 = vpop.f32.mrb[0].mxu0
  %v880 = vadd.f32 %v632, %v879
  %v881 = vpop.f32.mrb[0].mxu0
  %882 = vmatprep.mubr.bf16.mxu0 0
  %883 = vmatmul.mubr.bf16.gmra.mrb[0].mxu0 %v695
  %v884 = vpop.f32.mrb[0].mxu0
  %v885 = vadd.f32 %v632, %v884
  %v886 = vpop.f32.mrb[0].mxu0
  %v887 = vpop.f32.mrb[0].mxu0
  %v888 = vadd.f32 %v632, %v887
  %v889 = vpop.f32.mrb[0].mxu0
  %890 = vmatprep.mubr.bf16.mxu0 0
  %891 = vmatmul.mubr.bf16.gmra.mrb[0].mxu0 %v698
  %v892 = vpop.f32.mrb[0].mxu0
  %v893 = vadd.f32 %v632, %v892
  %v894 = vpop.f32.mrb[0].mxu0
  %v895 = vpop.f32.mrb[0].mxu0
  %v896 = vadd.f32 %v632, %v895
  %v897 = vpop.f32.mrb[0].mxu0
  %898 = vmatprep.mubr.bf16.mxu0 0
  %899 = vmatmul.mubr.bf16.gmra.mrb[0].mxu0 %v701
  %v900 = vpop.f32.mrb[0].mxu0
  %v901 = vadd.f32 %v632, %v900
  %v902 = vpop.f32.mrb[0].mxu0
  %v903 = vpop.f32.mrb[0].mxu0
  %v904 = vadd.f32 %v632, %v903
  %v905 = vpop.f32.mrb[0].mxu0
  %906 = vmatprep.mubr.bf16.mxu0 0
  %907 = vmatmul.mubr.bf16.gmra.mrb[0].mxu0 %v704
  %v908 = vpop.f32.mrb[0].mxu0
  %v909 = vadd.f32 %v632, %v908
  %v910 = vpop.f32.mrb[0].mxu0
  %v911 = vpop.f32.mrb[0].mxu0
  %v912 = vadd.f32 %v632, %v911
  %v913 = vpop.f32.mrb[0].mxu0
  %914 = vmatprep.mubr.bf16.mxu0 0
  %915 = vmatmul.mubr.bf16.gmra.mrb[0].mxu0 %v707
  %v916 = vpop.f32.mrb[0].mxu0
  %v917 = vadd.f32 %v632, %v916
  %v918 = vpop.f32.mrb[0].mxu0
  %v919 = vpop.f32.mrb[0].mxu0
  %v920 = vadd.f32 %v632, %v919
  %v921 = vpop.f32.mrb[0].mxu0
  %922 = vmatprep.mubr.bf16.mxu0 0
  %923 = vmatmul.mubr.bf16.gmra.mrb[0].mxu0 %v710
  %v924 = vpop.f32.mrb[0].mxu0
  %v925 = vadd.f32 %v632, %v924
  %v926 = vpop.f32.mrb[0].mxu0
  %v927 = vpop.f32.mrb[0].mxu0
  %v928 = vadd.f32 %v632, %v927
  %v929 = vpop.f32.mrb[0].mxu0
  %930 = vmatprep.mubr.bf16.mxu0 0
  %931 = vmatmul.mubr.bf16.gmra.mrb[0].mxu0 %v713
  %v932 = vpop.f32.mrb[0].mxu0
  %v933 = vadd.f32 %v632, %v932
  %v934 = vpop.f32.mrb[0].mxu0
  %v935 = vpop.f32.mrb[0].mxu0
  %v936 = vadd.f32 %v632, %v935
  %v937 = vpop.f32.mrb[0].mxu0
  %938 = vmatprep.mubr.bf16.mxu0 0
  %939 = vmatmul.mubr.bf16.gmra.mrb[0].mxu0 %v716
  %v940 = vpop.f32.mrb[0].mxu0
  %v941 = vadd.f32 %v632, %v940
  %v942 = vpop.f32.mrb[0].mxu0
  %v943 = vpop.f32.mrb[0].mxu0
  %v944 = vadd.f32 %v632, %v943
  %v945 = vpop.f32.mrb[0].mxu0
  %946 = vmatprep.mubr.bf16.mxu0 0
  %947 = vmatmul.mubr.bf16.gmra.mrb[0].mxu0 %v719
  %v948 = vpop.f32.mrb[0].mxu0
  %v949 = vadd.f32 %v632, %v948
  %v950 = vpop.f32.mrb[0].mxu0
  %v951 = vpop.f32.mrb[0].mxu0
  %v952 = vadd.f32 %v632, %v951
  %v953 = vpop.f32.mrb[0].mxu0
  %954 = vmatprep.mubr.bf16.mxu0 0
  %955 = vmatmul.mubr.bf16.gmra.mrb[0].mxu0 %v722
  %v956 = vpop.f32.mrb[0].mxu0
  %v957 = vadd.f32 %v632, %v956
  %v958 = vpop.f32.mrb[0].mxu0
  %v959 = vpop.f32.mrb[0].mxu0
  %v960 = vadd.f32 %v632, %v959
  %v961 = vpop.f32.mrb[0].mxu0
  %962 = vmatprep.mubr.bf16.mxu0 0
  %963 = vmatmul.mubr.bf16.gmra.mrb[0].mxu0 %v725
  %v964 = vpop.f32.mrb[0].mxu0
  %v965 = vadd.f32 %v632, %v964
  %v966 = vpop.f32.mrb[0].mxu0
  %v967 = vpop.f32.mrb[0].mxu0
  %v968 = vadd.f32 %v632, %v967
  %v969 = vpop.f32.mrb[0].mxu0
  %970 = vmatprep.mubr.bf16.mxu0 0
  %971 = vmatmul.mubr.bf16.gmra.mrb[0].mxu0 %v728
  %v972 = vpop.f32.mrb[0].mxu0
  %v973 = vadd.f32 %v632, %v972
  %v974 = vpop.f32.mrb[0].mxu0
  %v975 = vpop.f32.mrb[0].mxu0
  %v976 = vadd.f32 %v632, %v975
  %v977 = vpop.f32.mrb[0].mxu0
  %978 = vmatprep.mubr.bf16.mxu0 0
  %979 = vmatmul.mubr.bf16.gmra.mrb[0].mxu0 %v731
  %v980 = vpop.f32.mrb[0].mxu0
  %v981 = vadd.f32 %v632, %v980
  %v982 = vpop.f32.mrb[0].mxu0
  %v983 = vpop.f32.mrb[0].mxu0
  %v984 = vadd.f32 %v632, %v983
  %v985 = vpop.f32.mrb[0].mxu0
  %986 = vmatprep.mubr.bf16.mxu0 0
  %987 = vmatmul.mubr.bf16.gmra.mrb[0].mxu0 %v734
  %v988 = vpop.f32.mrb[0].mxu0
  %v989 = vadd.f32 %v632, %v988
  %v990 = vpop.f32.mrb[0].mxu0
  %v991 = vpop.f32.mrb[0].mxu0
  %v992 = vadd.f32 %v632, %v991
  %v993 = vpop.f32.mrb[0].mxu0
  %994 = vmatprep.mubr.bf16.mxu0 0
  %995 = vmatmul.mubr.bf16.gmra.mrb[0].mxu0 %v737
  %v996 = vpop.f32.mrb[0].mxu0
  %v997 = vadd.f32 %v632, %v996
  %v998 = vpop.f32.mrb[0].mxu0
  %v999 = vpop.f32.mrb[0].mxu0
  %v1000 = vadd.f32 %v632, %v999
  %v1001 = vpop.f32.mrb[0].mxu0
  %1002 = vmatprep.mubr.bf16.mxu0 0
  %1003 = vmatmul.mubr.bf16.gmra.mrb[0].mxu0 %v740
  %v1004 = vpop.f32.mrb[0].mxu0
  %v1005 = vadd.f32 %v632, %v1004
  %v1006 = vpop.f32.mrb[0].mxu0
  %v1007 = vpop.f32.mrb[0].mxu0
  %v1008 = vadd.f32 %v632, %v1007
  %v1009 = vpop.f32.mrb[0].mxu0
  %1010 = vmatprep.mubr.bf16.mxu0 0
  %1011 = vmatmul.mubr.bf16.gmra.mrb[0].mxu0 %v743
  %v1012 = vpop.f32.mrb[0].mxu0
  %v1013 = vadd.f32 %v632, %v1012
  %v1014 = vpop.f32.mrb[0].mxu0
  %v1015 = vpop.f32.mrb[0].mxu0
  %v1016 = vadd.f32 %v632, %v1015
  %v1017 = vpop.f32.mrb[0].mxu0
  %1018 = vmatprep.mubr.bf16.mxu0 0
  %1019 = vmatmul.mubr.bf16.gmra.mrb[0].mxu0 %v746
  %v1020 = vpop.f32.mrb[0].mxu0
  %v1021 = vadd.f32 %v632, %v1020
  %v1022 = vpop.f32.mrb[0].mxu0
  %v1023 = vpop.f32.mrb[0].mxu0
  %v1024 = vadd.f32 %v632, %v1023
  %v1025 = vpop.f32.mrb[0].mxu0
  %1026 = vmatprep.mubr.bf16.mxu0 0
  %1027 = vmatmul.mubr.bf16.gmra.mrb[0].mxu0 %v749
  %v1028 = vpop.f32.mrb[0].mxu0
  %v1029 = vadd.f32 %v632, %v1028
  %v1030 = vpop.f32.mrb[0].mxu0
  %v1031 = vpop.f32.mrb[0].mxu0
  %v1032 = vadd.f32 %v632, %v1031
  %v1033 = vpop.f32.mrb[0].mxu0
  %1034 = vmatprep.mubr.bf16.mxu0 0
  %1035 = vmatmul.mubr.bf16.gmra.mrb[0].mxu0 %v752
  %v1036 = vpop.f32.mrb[0].mxu0
  %v1037 = vadd.f32 %v632, %v1036
  %v1038 = vpop.f32.mrb[0].mxu0
  %v1039 = vpop.f32.mrb[0].mxu0
  %v1040 = vadd.f32 %v632, %v1039
  %v1041 = vpop.f32.mrb[0].mxu0
  %1042 = vdwg.mxu0
  %v1043 = vmax.f32 %v789, 0.0
  %v1044 = vmax.f32 %v792, 0.0
  %v1045 = vmax.f32 %v797, 0.0
  %v1046 = vmax.f32 %v800, 0.0
  %v1047 = vmax.f32 %v805, 0.0
  %v1048 = vmax.f32 %v808, 0.0
  %v1049 = vmax.f32 %v813, 0.0
  %v1050 = vmax.f32 %v816, 0.0
  %v1051 = vmax.f32 %v821, 0.0
  %v1052 = vmax.f32 %v824, 0.0
  %v1053 = vmax.f32 %v829, 0.0
  %v1054 = vmax.f32 %v832, 0.0
  %v1055 = vmax.f32 %v837, 0.0
  %v1056 = vmax.f32 %v840, 0.0
  %v1057 = vmax.f32 %v845, 0.0
  %v1058 = vmax.f32 %v848, 0.0
  %v1059 = vmax.f32 %v853, 0.0
  %v1060 = vmax.f32 %v856, 0.0
  %v1061 = vmax.f32 %v861, 0.0
  %v1062 = vmax.f32 %v864, 0.0
  %v1063 = vmax.f32 %v869, 0.0
  %v1064 = vmax.f32 %v872, 0.0
  %v1065 = vmax.f32 %v877, 0.0
  %v1066 = vmax.f32 %v880, 0.0
  %v1067 = vmax.f32 %v885, 0.0
  %v1068 = vmax.f32 %v888, 0.0
  %v1069 = vmax.f32 %v893, 0.0
  %v1070 = vmax.f32 %v896, 0.0
  %v1071 = vmax.f32 %v901, 0.0
  %v1072 = vmax.f32 %v904, 0.0
  %v1073 = vmax.f32 %v909, 0.0
  %v1074 = vmax.f32 %v912, 0.0
  %v1075 = vmax.f32 %v917, 0.0
  %v1076 = vmax.f32 %v920, 0.0
  %v1077 = vmax.f32 %v925, 0.0
  %v1078 = vmax.f32 %v928, 0.0
  %v1079 = vmax.f32 %v933, 0.0
  %v1080 = vmax.f32 %v936, 0.0
  %v1081 = vmax.f32 %v941, 0.0
  %v1082 = vmax.f32 %v944, 0.0
  %v1083 = vmax.f32 %v949, 0.0
  %v1084 = vmax.f32 %v952, 0.0
  %v1085 = vmax.f32 %v957, 0.0
  %v1086 = vmax.f32 %v960, 0.0
  %v1087 = vmax.f32 %v965, 0.0
  %v1088 = vmax.f32 %v968, 0.0
  %v1089 = vmax.f32 %v973, 0.0
  %v1090 = vmax.f32 %v976, 0.0
  %v1091 = vmax.f32 %v981, 0.0
  %v1092 = vmax.f32 %v984, 0.0
  %v1093 = vmax.f32 %v989, 0.0
  %v1094 = vmax.f32 %v992, 0.0
  %v1095 = vmax.f32 %v997, 0.0
  %v1096 = vmax.f32 %v1000, 0.0
  %v1097 = vmax.f32 %v1005, 0.0
  %v1098 = vmax.f32 %v1008, 0.0
  %v1099 = vmax.f32 %v1013, 0.0
  %v1100 = vmax.f32 %v1016, 0.0
  %v1101 = vmax.f32 %v1021, 0.0
  %v1102 = vmax.f32 %v1024, 0.0
  %v1103 = vmax.f32 %v1029, 0.0
  %v1104 = vmax.f32 %v1032, 0.0
  %v1105 = vmax.f32 %v1037, 0.0
  %v1106 = vmax.f32 %v1040, 0.0
  %v1107 = vpack.c.bf16 %v1044, %v1043
  %v1108 = vpack.c.bf16 %v1046, %v1045
  %v1109 = vpack.c.bf16 %v1048, %v1047
  %v1110 = vpack.c.bf16 %v1050, %v1049
  %v1111 = vpack.c.bf16 %v1052, %v1051
  %v1112 = vpack.c.bf16 %v1054, %v1053
  %v1113 = vpack.c.bf16 %v1056, %v1055
  %v1114 = vpack.c.bf16 %v1058, %v1057
  %v1115 = vpack.c.bf16 %v1060, %v1059
  %v1116 = vpack.c.bf16 %v1062, %v1061
  %v1117 = vpack.c.bf16 %v1064, %v1063
  %v1118 = vpack.c.bf16 %v1066, %v1065
  %v1119 = vpack.c.bf16 %v1068, %v1067
  %v1120 = vpack.c.bf16 %v1070, %v1069
  %v1121 = vpack.c.bf16 %v1072, %v1071
  %v1122 = vpack.c.bf16 %v1074, %v1073
  %v1123 = vpack.c.bf16 %v1076, %v1075
  %v1124 = vpack.c.bf16 %v1078, %v1077
  %v1125 = vpack.c.bf16 %v1080, %v1079
  %v1126 = vpack.c.bf16 %v1082, %v1081
  %v1127 = vpack.c.bf16 %v1084, %v1083
  %v1128 = vpack.c.bf16 %v1086, %v1085
  %v1129 = vpack.c.bf16 %v1088, %v1087
  %v1130 = vpack.c.bf16 %v1090, %v1089
  %v1131 = vpack.c.bf16 %v1092, %v1091
  %v1132 = vpack.c.bf16 %v1094, %v1093
  %v1133 = vpack.c.bf16 %v1096, %v1095
  %v1134 = vpack.c.bf16 %v1098, %v1097
  %v1135 = vpack.c.bf16 %v1100, %v1099
  %v1136 = vpack.c.bf16 %v1102, %v1101
  %v1137 = vpack.c.bf16 %v1104, %v1103
  %v1138 = vpack.c.bf16 %v1106, %v1105
  %v1139 = vld [vmem:[%s3] sm:$0xf]
  %v1140 = vld [vmem:[%s3 + $0x4] sm:$0xf]
  %v1141 = vld [vmem:[%s3 + $0x8] sm:$0xf]
  %v1142 = vld [vmem:[%s3 + $0xc] sm:$0xf]
  %v1143 = vld [vmem:[%s3 + $0x10] sm:$0xf]
  %v1144 = vld [vmem:[%s3 + $0x14] sm:$0xf]
  %v1145 = vld [vmem:[%s3 + $0x18] sm:$0xf]
  %v1146 = vld [vmem:[%s3 + $0x1c] sm:$0xf]
  %v1147 = vld [vmem:[%s4 + $0x2] sm:$0x1]
  %v1148 = vlaneseq
  %v1149 = vshrl.u32 %v1148, 7
  %v1150 = vsub.s32 0, %v1149
  %v1151 = vrot.slane %v1147, %v1150
  %v1160 = vunpack.c.l.b16 %v1139
  %v1161 = vunpack.c.l.b16 %v1140
  %v1162 = vunpack.c.l.b16 %v1141
  %v1163 = vunpack.c.l.b16 %v1142
  %v1164 = vunpack.c.l.b16 %v1143
  %v1165 = vunpack.c.l.b16 %v1144
  %v1166 = vunpack.c.l.b16 %v1145
  %v1167 = vunpack.c.l.b16 %v1146
  %v1168 = vpack.c.b16 %v1161, %v1160
  %v1169 = vpack.c.b16 %v1163, %v1162
  %v1170 = vpack.c.b16 %v1165, %v1164
  %v1171 = vpack.c.b16 %v1167, %v1166
  %v1177 = vsel %vm657, %v1107, 0
  %v1180 = vsel %vm657, %v1108, 0
  %v1183 = vsel %vm657, %v1109, 0
  %v1186 = vsel %vm657, %v1110, 0
  %v1189 = vsel %vm657, %v1111, 0
  %v1192 = vsel %vm657, %v1112, 0
  %v1195 = vsel %vm657, %v1113, 0
  %v1198 = vsel %vm657, %v1114, 0
  %v1201 = vsel %vm657, %v1115, 0
  %v1204 = vsel %vm657, %v1116, 0
  %v1207 = vsel %vm657, %v1117, 0
  %v1210 = vsel %vm657, %v1118, 0
  %v1213 = vsel %vm657, %v1119, 0
  %v1216 = vsel %vm657, %v1120, 0
  %v1219 = vsel %vm657, %v1121, 0
  %v1222 = vsel %vm657, %v1122, 0
  %v1225 = vsel %vm657, %v1123, 0
  %v1228 = vsel %vm657, %v1124, 0
  %v1231 = vsel %vm657, %v1125, 0
  %v1234 = vsel %vm657, %v1126, 0
  %v1237 = vsel %vm657, %v1127, 0
  %v1240 = vsel %vm657, %v1128, 0
  %v1243 = vsel %vm657, %v1129, 0
  %v1246 = vsel %vm657, %v1130, 0
  %v1249 = vsel %vm657, %v1131, 0
  %v1252 = vsel %vm657, %v1132, 0
  %v1255 = vsel %vm657, %v1133, 0
  %v1258 = vsel %vm657, %v1134, 0
  %v1261 = vsel %vm657, %v1135, 0
  %v1264 = vsel %vm657, %v1136, 0
  %v1267 = vsel %vm657, %v1137, 0
  %v1270 = vsel %vm657, %v1138, 0
  %1272 = vmatprep.subr.bf16.mxu0 0
  %1273 = vmatpush1.bf16.msra.mxu0 %v1168
  %1274 = vmatprep.subr.bf16.mxu0 0
  %1275 = vmatpush1.bf16.msra.mxu0 %v1169
  %1276 = vmatprep.subr.bf16.mxu0 0
  %1277 = vmatpush1.bf16.msra.mxu0 %v1170
  %1278 = vmatprep.subr.bf16.mxu0 0
  %1279 = vmatpush1.bf16.msra.mxu0 %v1171
  %1280 = vmatprep.subr.bf16.mxu0 0
  %1281 = vmatpush1.bf16.msra.mxu0 0
  %1282 = vmatprep.subr.bf16.mxu0 0
  %1283 = vmatpush1.bf16.msra.mxu0 0
  %1284 = vmatprep.subr.bf16.mxu0 0
  %1285 = vmatpush1.bf16.msra.mxu0 0
  %1286 = vmatprep.subr.bf16.mxu0 0
  %1287 = vmatpush1.bf16.msra.mxu0 0
  %1288 = vmatprep.subr.bf16.mxu0 0
  %1289 = vmatpush1.bf16.msra.mxu0 0
  %1290 = vmatprep.subr.bf16.mxu0 0
  %1291 = vmatpush1.bf16.msra.mxu0 0
  %1292 = vmatprep.subr.bf16.mxu0 0
  %1293 = vmatpush1.bf16.msra.mxu0 0
  %1294 = vmatprep.subr.bf16.mxu0 0
  %1295 = vmatpush1.bf16.msra.mxu0 0
  %1296 = vmatprep.subr.bf16.mxu0 0
  %1297 = vmatpush1.bf16.msra.mxu0 0
  %1298 = vmatprep.subr.bf16.mxu0 0
  %1299 = vmatpush1.bf16.msra.mxu0 0
  %1300 = vmatprep.subr.bf16.mxu0 0
  %1301 = vmatpush1.bf16.msra.mxu0 0
  %1302 = vmatprep.subr.bf16.mxu0 0
  %1303 = vmatpush1.bf16.msra.mxu0 0
  %1304 = vmatprep.mubr.bf16.mxu0 0
  %1305 = vmatmul.mubr.bf16.gmra.mrb[0].mxu0 %v1177
  %v1306 = vpop.f32.mrb[0].mxu0
  %v1307 = vadd.f32 %v1151, %v1306
  %v1308 = vpop.f32.mrb[0].mxu0
  %v1309 = vpop.f32.mrb[0].mxu0
  %v1310 = vadd.f32 %v1151, %v1309
  %v1311 = vpop.f32.mrb[0].mxu0
  %1312 = vmatprep.mubr.bf16.mxu0 0
  %1313 = vmatmul.mubr.bf16.gmra.mrb[0].mxu0 %v1180
  %v1314 = vpop.f32.mrb[0].mxu0
  %v1315 = vadd.f32 %v1151, %v1314
  %v1316 = vpop.f32.mrb[0].mxu0
  %v1317 = vpop.f32.mrb[0].mxu0
  %v1318 = vadd.f32 %v1151, %v1317
  %v1319 = vpop.f32.mrb[0].mxu0
  %1320 = vmatprep.mubr.bf16.mxu0 0
  %1321 = vmatmul.mubr.bf16.gmra.mrb[0].mxu0 %v1183
  %v1322 = vpop.f32.mrb[0].mxu0
  %v1323 = vadd.f32 %v1151, %v1322
  %v1324 = vpop.f32.mrb[0].mxu0
  %v1325 = vpop.f32.mrb[0].mxu0
  %v1326 = vadd.f32 %v1151, %v1325
  %v1327 = vpop.f32.mrb[0].mxu0
  %1328 = vmatprep.mubr.bf16.mxu0 0
  %1329 = vmatmul.mubr.bf16.gmra.mrb[0].mxu0 %v1186
  %v1330 = vpop.f32.mrb[0].mxu0
  %v1331 = vadd.f32 %v1151, %v1330
  %v1332 = vpop.f32.mrb[0].mxu0
  %v1333 = vpop.f32.mrb[0].mxu0
  %v1334 = vadd.f32 %v1151, %v1333
  %v1335 = vpop.f32.mrb[0].mxu0
  %1336 = vmatprep.mubr.bf16.mxu0 0
  %1337 = vmatmul.mubr.bf16.gmra.mrb[0].mxu0 %v1189
  %v1338 = vpop.f32.mrb[0].mxu0
  %v1339 = vadd.f32 %v1151, %v1338
  %v1340 = vpop.f32.mrb[0].mxu0
  %v1341 = vpop.f32.mrb[0].mxu0
  %v1342 = vadd.f32 %v1151, %v1341
  %v1343 = vpop.f32.mrb[0].mxu0
  %1344 = vmatprep.mubr.bf16.mxu0 0
  %1345 = vmatmul.mubr.bf16.gmra.mrb[0].mxu0 %v1192
  %v1346 = vpop.f32.mrb[0].mxu0
  %v1347 = vadd.f32 %v1151, %v1346
  %v1348 = vpop.f32.mrb[0].mxu0
  %v1349 = vpop.f32.mrb[0].mxu0
  %v1350 = vadd.f32 %v1151, %v1349
  %v1351 = vpop.f32.mrb[0].mxu0
  %1352 = vmatprep.mubr.bf16.mxu0 0
  %1353 = vmatmul.mubr.bf16.gmra.mrb[0].mxu0 %v1195
  %v1354 = vpop.f32.mrb[0].mxu0
  %v1355 = vadd.f32 %v1151, %v1354
  %v1356 = vpop.f32.mrb[0].mxu0
  %v1357 = vpop.f32.mrb[0].mxu0
  %v1358 = vadd.f32 %v1151, %v1357
  %v1359 = vpop.f32.mrb[0].mxu0
  %1360 = vmatprep.mubr.bf16.mxu0 0
  %1361 = vmatmul.mubr.bf16.gmra.mrb[0].mxu0 %v1198
  %v1362 = vpop.f32.mrb[0].mxu0
  %v1363 = vadd.f32 %v1151, %v1362
  %v1364 = vpop.f32.mrb[0].mxu0
  %v1365 = vpop.f32.mrb[0].mxu0
  %v1366 = vadd.f32 %v1151, %v1365
  %v1367 = vpop.f32.mrb[0].mxu0
  %1368 = vmatprep.mubr.bf16.mxu0 0
  %1369 = vmatmul.mubr.bf16.gmra.mrb[0].mxu0 %v1201
  %v1370 = vpop.f32.mrb[0].mxu0
  %v1371 = vadd.f32 %v1151, %v1370
  %v1372 = vpop.f32.mrb[0].mxu0
  %v1373 = vpop.f32.mrb[0].mxu0
  %v1374 = vadd.f32 %v1151, %v1373
  %v1375 = vpop.f32.mrb[0].mxu0
  %1376 = vmatprep.mubr.bf16.mxu0 0
  %1377 = vmatmul.mubr.bf16.gmra.mrb[0].mxu0 %v1204
  %v1378 = vpop.f32.mrb[0].mxu0
  %v1379 = vadd.f32 %v1151, %v1378
  %v1380 = vpop.f32.mrb[0].mxu0
  %v1381 = vpop.f32.mrb[0].mxu0
  %v1382 = vadd.f32 %v1151, %v1381
  %v1383 = vpop.f32.mrb[0].mxu0
  %1384 = vmatprep.mubr.bf16.mxu0 0
  %1385 = vmatmul.mubr.bf16.gmra.mrb[0].mxu0 %v1207
  %v1386 = vpop.f32.mrb[0].mxu0
  %v1387 = vadd.f32 %v1151, %v1386
  %v1388 = vpop.f32.mrb[0].mxu0
  %v1389 = vpop.f32.mrb[0].mxu0
  %v1390 = vadd.f32 %v1151, %v1389
  %v1391 = vpop.f32.mrb[0].mxu0
  %1392 = vmatprep.mubr.bf16.mxu0 0
  %1393 = vmatmul.mubr.bf16.gmra.mrb[0].mxu0 %v1210
  %v1394 = vpop.f32.mrb[0].mxu0
  %v1395 = vadd.f32 %v1151, %v1394
  %v1396 = vpop.f32.mrb[0].mxu0
  %v1397 = vpop.f32.mrb[0].mxu0
  %v1398 = vadd.f32 %v1151, %v1397
  %v1399 = vpop.f32.mrb[0].mxu0
  %1400 = vmatprep.mubr.bf16.mxu0 0
  %1401 = vmatmul.mubr.bf16.gmra.mrb[0].mxu0 %v1213
  %v1402 = vpop.f32.mrb[0].mxu0
  %v1403 = vadd.f32 %v1151, %v1402
  %v1404 = vpop.f32.mrb[0].mxu0
  %v1405 = vpop.f32.mrb[0].mxu0
  %v1406 = vadd.f32 %v1151, %v1405
  %v1407 = vpop.f32.mrb[0].mxu0
  %1408 = vmatprep.mubr.bf16.mxu0 0
  %1409 = vmatmul.mubr.bf16.gmra.mrb[0].mxu0 %v1216
  %v1410 = vpop.f32.mrb[0].mxu0
  %v1411 = vadd.f32 %v1151, %v1410
  %v1412 = vpop.f32.mrb[0].mxu0
  %v1413 = vpop.f32.mrb[0].mxu0
  %v1414 = vadd.f32 %v1151, %v1413
  %v1415 = vpop.f32.mrb[0].mxu0
  %1416 = vmatprep.mubr.bf16.mxu0 0
  %1417 = vmatmul.mubr.bf16.gmra.mrb[0].mxu0 %v1219
  %v1418 = vpop.f32.mrb[0].mxu0
  %v1419 = vadd.f32 %v1151, %v1418
  %v1420 = vpop.f32.mrb[0].mxu0
  %v1421 = vpop.f32.mrb[0].mxu0
  %v1422 = vadd.f32 %v1151, %v1421
  %v1423 = vpop.f32.mrb[0].mxu0
  %1424 = vmatprep.mubr.bf16.mxu0 0
  %1425 = vmatmul.mubr.bf16.gmra.mrb[0].mxu0 %v1222
  %v1426 = vpop.f32.mrb[0].mxu0
  %v1427 = vadd.f32 %v1151, %v1426
  %v1428 = vpop.f32.mrb[0].mxu0
  %v1429 = vpop.f32.mrb[0].mxu0
  %v1430 = vadd.f32 %v1151, %v1429
  %v1431 = vpop.f32.mrb[0].mxu0
  %1432 = vmatprep.mubr.bf16.mxu0 0
  %1433 = vmatmul.mubr.bf16.gmra.mrb[0].mxu0 %v1225
  %v1434 = vpop.f32.mrb[0].mxu0
  %v1435 = vadd.f32 %v1151, %v1434
  %v1436 = vpop.f32.mrb[0].mxu0
  %v1437 = vpop.f32.mrb[0].mxu0
  %v1438 = vadd.f32 %v1151, %v1437
  %v1439 = vpop.f32.mrb[0].mxu0
  %1440 = vmatprep.mubr.bf16.mxu0 0
  %1441 = vmatmul.mubr.bf16.gmra.mrb[0].mxu0 %v1228
  %v1442 = vpop.f32.mrb[0].mxu0
  %v1443 = vadd.f32 %v1151, %v1442
  %v1444 = vpop.f32.mrb[0].mxu0
  %v1445 = vpop.f32.mrb[0].mxu0
  %v1446 = vadd.f32 %v1151, %v1445
  %v1447 = vpop.f32.mrb[0].mxu0
  %1448 = vmatprep.mubr.bf16.mxu0 0
  %1449 = vmatmul.mubr.bf16.gmra.mrb[0].mxu0 %v1231
  %v1450 = vpop.f32.mrb[0].mxu0
  %v1451 = vadd.f32 %v1151, %v1450
  %v1452 = vpop.f32.mrb[0].mxu0
  %v1453 = vpop.f32.mrb[0].mxu0
  %v1454 = vadd.f32 %v1151, %v1453
  %v1455 = vpop.f32.mrb[0].mxu0
  %1456 = vmatprep.mubr.bf16.mxu0 0
  %1457 = vmatmul.mubr.bf16.gmra.mrb[0].mxu0 %v1234
  %v1458 = vpop.f32.mrb[0].mxu0
  %v1459 = vadd.f32 %v1151, %v1458
  %v1460 = vpop.f32.mrb[0].mxu0
  %v1461 = vpop.f32.mrb[0].mxu0
  %v1462 = vadd.f32 %v1151, %v1461
  %v1463 = vpop.f32.mrb[0].mxu0
  %1464 = vmatprep.mubr.bf16.mxu0 0
  %1465 = vmatmul.mubr.bf16.gmra.mrb[0].mxu0 %v1237
  %v1466 = vpop.f32.mrb[0].mxu0
  %v1467 = vadd.f32 %v1151, %v1466
  %v1468 = vpop.f32.mrb[0].mxu0
  %v1469 = vpop.f32.mrb[0].mxu0
  %v1470 = vadd.f32 %v1151, %v1469
  %v1471 = vpop.f32.mrb[0].mxu0
  %1472 = vmatprep.mubr.bf16.mxu0 0
  %1473 = vmatmul.mubr.bf16.gmra.mrb[0].mxu0 %v1240
  %v1474 = vpop.f32.mrb[0].mxu0
  %v1475 = vadd.f32 %v1151, %v1474
  %v1476 = vpop.f32.mrb[0].mxu0
  %v1477 = vpop.f32.mrb[0].mxu0
  %v1478 = vadd.f32 %v1151, %v1477
  %v1479 = vpop.f32.mrb[0].mxu0
  %1480 = vmatprep.mubr.bf16.mxu0 0
  %1481 = vmatmul.mubr.bf16.gmra.mrb[0].mxu0 %v1243
  %v1482 = vpop.f32.mrb[0].mxu0
  %v1483 = vadd.f32 %v1151, %v1482
  %v1484 = vpop.f32.mrb[0].mxu0
  %v1485 = vpop.f32.mrb[0].mxu0
  %v1486 = vadd.f32 %v1151, %v1485
  %v1487 = vpop.f32.mrb[0].mxu0
  %1488 = vmatprep.mubr.bf16.mxu0 0
  %1489 = vmatmul.mubr.bf16.gmra.mrb[0].mxu0 %v1246
  %v1490 = vpop.f32.mrb[0].mxu0
  %v1491 = vadd.f32 %v1151, %v1490
  %v1492 = vpop.f32.mrb[0].mxu0
  %v1493 = vpop.f32.mrb[0].mxu0
  %v1494 = vadd.f32 %v1151, %v1493
  %v1495 = vpop.f32.mrb[0].mxu0
  %1496 = vmatprep.mubr.bf16.mxu0 0
  %1497 = vmatmul.mubr.bf16.gmra.mrb[0].mxu0 %v1249
  %v1498 = vpop.f32.mrb[0].mxu0
  %v1499 = vadd.f32 %v1151, %v1498
  %v1500 = vpop.f32.mrb[0].mxu0
  %v1501 = vpop.f32.mrb[0].mxu0
  %v1502 = vadd.f32 %v1151, %v1501
  %v1503 = vpop.f32.mrb[0].mxu0
  %1504 = vmatprep.mubr.bf16.mxu0 0
  %1505 = vmatmul.mubr.bf16.gmra.mrb[0].mxu0 %v1252
  %v1506 = vpop.f32.mrb[0].mxu0
  %v1507 = vadd.f32 %v1151, %v1506
  %v1508 = vpop.f32.mrb[0].mxu0
  %v1509 = vpop.f32.mrb[0].mxu0
  %v1510 = vadd.f32 %v1151, %v1509
  %v1511 = vpop.f32.mrb[0].mxu0
  %1512 = vmatprep.mubr.bf16.mxu0 0
  %1513 = vmatmul.mubr.bf16.gmra.mrb[0].mxu0 %v1255
  %v1514 = vpop.f32.mrb[0].mxu0
  %v1515 = vadd.f32 %v1151, %v1514
  %v1516 = vpop.f32.mrb[0].mxu0
  %v1517 = vpop.f32.mrb[0].mxu0
  %v1518 = vadd.f32 %v1151, %v1517
  %v1519 = vpop.f32.mrb[0].mxu0
  %1520 = vmatprep.mubr.bf16.mxu0 0
  %1521 = vmatmul.mubr.bf16.gmra.mrb[0].mxu0 %v1258
  %v1522 = vpop.f32.mrb[0].mxu0
  %v1523 = vadd.f32 %v1151, %v1522
  %v1524 = vpop.f32.mrb[0].mxu0
  %v1525 = vpop.f32.mrb[0].mxu0
  %v1526 = vadd.f32 %v1151, %v1525
  %v1527 = vpop.f32.mrb[0].mxu0
  %1528 = vmatprep.mubr.bf16.mxu0 0
  %1529 = vmatmul.mubr.bf16.gmra.mrb[0].mxu0 %v1261
  %v1530 = vpop.f32.mrb[0].mxu0
  %v1531 = vadd.f32 %v1151, %v1530
  %v1532 = vpop.f32.mrb[0].mxu0
  %v1533 = vpop.f32.mrb[0].mxu0
  %v1534 = vadd.f32 %v1151, %v1533
  %v1535 = vpop.f32.mrb[0].mxu0
  %1536 = vmatprep.mubr.bf16.mxu0 0
  %1537 = vmatmul.mubr.bf16.gmra.mrb[0].mxu0 %v1264
  %v1538 = vpop.f32.mrb[0].mxu0
  %v1539 = vadd.f32 %v1151, %v1538
  %v1540 = vpop.f32.mrb[0].mxu0
  %v1541 = vpop.f32.mrb[0].mxu0
  %v1542 = vadd.f32 %v1151, %v1541
  %v1543 = vpop.f32.mrb[0].mxu0
  %1544 = vmatprep.mubr.bf16.mxu0 0
  %1545 = vmatmul.mubr.bf16.gmra.mrb[0].mxu0 %v1267
  %v1546 = vpop.f32.mrb[0].mxu0
  %v1547 = vadd.f32 %v1151, %v1546
  %v1548 = vpop.f32.mrb[0].mxu0
  %v1549 = vpop.f32.mrb[0].mxu0
  %v1550 = vadd.f32 %v1151, %v1549
  %v1551 = vpop.f32.mrb[0].mxu0
  %1552 = vmatprep.mubr.bf16.mxu0 0
  %1553 = vmatmul.mubr.bf16.gmra.mrb[0].mxu0 %v1270
  %v1554 = vpop.f32.mrb[0].mxu0
  %v1555 = vadd.f32 %v1151, %v1554
  %v1556 = vpop.f32.mrb[0].mxu0
  %v1557 = vpop.f32.mrb[0].mxu0
  %v1558 = vadd.f32 %v1151, %v1557
  %v1559 = vpop.f32.mrb[0].mxu0
  %1560 = vdwg.mxu0
  %v1561 = vmax.f32 %v1307, 0.0
  %v1562 = vmax.f32 %v1310, 0.0
  %v1563 = vmax.f32 %v1315, 0.0
  %v1564 = vmax.f32 %v1318, 0.0
  %v1565 = vmax.f32 %v1323, 0.0
  %v1566 = vmax.f32 %v1326, 0.0
  %v1567 = vmax.f32 %v1331, 0.0
  %v1568 = vmax.f32 %v1334, 0.0
  %v1569 = vmax.f32 %v1339, 0.0
  %v1570 = vmax.f32 %v1342, 0.0
  %v1571 = vmax.f32 %v1347, 0.0
  %v1572 = vmax.f32 %v1350, 0.0
  %v1573 = vmax.f32 %v1355, 0.0
  %v1574 = vmax.f32 %v1358, 0.0
  %v1575 = vmax.f32 %v1363, 0.0
  %v1576 = vmax.f32 %v1366, 0.0
  %v1577 = vmax.f32 %v1371, 0.0
  %v1578 = vmax.f32 %v1374, 0.0
  %v1579 = vmax.f32 %v1379, 0.0
  %v1580 = vmax.f32 %v1382, 0.0
  %v1581 = vmax.f32 %v1387, 0.0
  %v1582 = vmax.f32 %v1390, 0.0
  %v1583 = vmax.f32 %v1395, 0.0
  %v1584 = vmax.f32 %v1398, 0.0
  %v1585 = vmax.f32 %v1403, 0.0
  %v1586 = vmax.f32 %v1406, 0.0
  %v1587 = vmax.f32 %v1411, 0.0
  %v1588 = vmax.f32 %v1414, 0.0
  %v1589 = vmax.f32 %v1419, 0.0
  %v1590 = vmax.f32 %v1422, 0.0
  %v1591 = vmax.f32 %v1427, 0.0
  %v1592 = vmax.f32 %v1430, 0.0
  %v1593 = vmax.f32 %v1435, 0.0
  %v1594 = vmax.f32 %v1438, 0.0
  %v1595 = vmax.f32 %v1443, 0.0
  %v1596 = vmax.f32 %v1446, 0.0
  %v1597 = vmax.f32 %v1451, 0.0
  %v1598 = vmax.f32 %v1454, 0.0
  %v1599 = vmax.f32 %v1459, 0.0
  %v1600 = vmax.f32 %v1462, 0.0
  %v1601 = vmax.f32 %v1467, 0.0
  %v1602 = vmax.f32 %v1470, 0.0
  %v1603 = vmax.f32 %v1475, 0.0
  %v1604 = vmax.f32 %v1478, 0.0
  %v1605 = vmax.f32 %v1483, 0.0
  %v1606 = vmax.f32 %v1486, 0.0
  %v1607 = vmax.f32 %v1491, 0.0
  %v1608 = vmax.f32 %v1494, 0.0
  %v1609 = vmax.f32 %v1499, 0.0
  %v1610 = vmax.f32 %v1502, 0.0
  %v1611 = vmax.f32 %v1507, 0.0
  %v1612 = vmax.f32 %v1510, 0.0
  %v1613 = vmax.f32 %v1515, 0.0
  %v1614 = vmax.f32 %v1518, 0.0
  %v1615 = vmax.f32 %v1523, 0.0
  %v1616 = vmax.f32 %v1526, 0.0
  %v1617 = vmax.f32 %v1531, 0.0
  %v1618 = vmax.f32 %v1534, 0.0
  %v1619 = vmax.f32 %v1539, 0.0
  %v1620 = vmax.f32 %v1542, 0.0
  %v1621 = vmax.f32 %v1547, 0.0
  %v1622 = vmax.f32 %v1550, 0.0
  %v1623 = vmax.f32 %v1555, 0.0
  %v1624 = vmax.f32 %v1558, 0.0
  %v1625 = vld [vmem:[%s4 + $0x3] sm:$0x1]
  %v1626 = vlaneseq
  %v1627 = vshrl.u32 %v1626, 7
  %v1628 = vsub.s32 0, %v1627
  %v1629 = vrot.slane %v1625, %v1628
  %v1630 = vmul.f32 %v1561, %v1629
  %v1631 = vmul.f32 %v1562, %v1629
  %v1632 = vmul.f32 %v1563, %v1629
  %v1633 = vmul.f32 %v1564, %v1629
  %v1634 = vmul.f32 %v1565, %v1629
  %v1635 = vmul.f32 %v1566, %v1629
  %v1636 = vmul.f32 %v1567, %v1629
  %v1637 = vmul.f32 %v1568, %v1629
  %v1638 = vmul.f32 %v1569, %v1629
  %v1639 = vmul.f32 %v1570, %v1629
  %v1640 = vmul.f32 %v1571, %v1629
  %v1641 = vmul.f32 %v1572, %v1629
  %v1642 = vmul.f32 %v1573, %v1629
  %v1643 = vmul.f32 %v1574, %v1629
  %v1644 = vmul.f32 %v1575, %v1629
  %v1645 = vmul.f32 %v1576, %v1629
  %v1646 = vmul.f32 %v1577, %v1629
  %v1647 = vmul.f32 %v1578, %v1629
  %v1648 = vmul.f32 %v1579, %v1629
  %v1649 = vmul.f32 %v1580, %v1629
  %v1650 = vmul.f32 %v1581, %v1629
  %v1651 = vmul.f32 %v1582, %v1629
  %v1652 = vmul.f32 %v1583, %v1629
  %v1653 = vmul.f32 %v1584, %v1629
  %v1654 = vmul.f32 %v1585, %v1629
  %v1655 = vmul.f32 %v1586, %v1629
  %v1656 = vmul.f32 %v1587, %v1629
  %v1657 = vmul.f32 %v1588, %v1629
  %v1658 = vmul.f32 %v1589, %v1629
  %v1659 = vmul.f32 %v1590, %v1629
  %v1660 = vmul.f32 %v1591, %v1629
  %v1661 = vmul.f32 %v1592, %v1629
  %v1662 = vmul.f32 %v1593, %v1629
  %v1663 = vmul.f32 %v1594, %v1629
  %v1664 = vmul.f32 %v1595, %v1629
  %v1665 = vmul.f32 %v1596, %v1629
  %v1666 = vmul.f32 %v1597, %v1629
  %v1667 = vmul.f32 %v1598, %v1629
  %v1668 = vmul.f32 %v1599, %v1629
  %v1669 = vmul.f32 %v1600, %v1629
  %v1670 = vmul.f32 %v1601, %v1629
  %v1671 = vmul.f32 %v1602, %v1629
  %v1672 = vmul.f32 %v1603, %v1629
  %v1673 = vmul.f32 %v1604, %v1629
  %v1674 = vmul.f32 %v1605, %v1629
  %v1675 = vmul.f32 %v1606, %v1629
  %v1676 = vmul.f32 %v1607, %v1629
  %v1677 = vmul.f32 %v1608, %v1629
  %v1678 = vmul.f32 %v1609, %v1629
  %v1679 = vmul.f32 %v1610, %v1629
  %v1680 = vmul.f32 %v1611, %v1629
  %v1681 = vmul.f32 %v1612, %v1629
  %v1682 = vmul.f32 %v1613, %v1629
  %v1683 = vmul.f32 %v1614, %v1629
  %v1684 = vmul.f32 %v1615, %v1629
  %v1685 = vmul.f32 %v1616, %v1629
  %v1686 = vmul.f32 %v1617, %v1629
  %v1687 = vmul.f32 %v1618, %v1629
  %v1688 = vmul.f32 %v1619, %v1629
  %v1689 = vmul.f32 %v1620, %v1629
  %v1690 = vmul.f32 %v1621, %v1629
  %v1691 = vmul.f32 %v1622, %v1629
  %v1692 = vmul.f32 %v1623, %v1629
  %v1693 = vmul.f32 %v1624, %v1629
  %1694 = vxpose.xlu0.b32.start [1/16] %v1630, 128
  %1695 = vxpose.xlu0.b32.cont [2/16] %v1631, 128
  %1696 = vxpose.xlu0.b32.cont [3/16] %v1632, 128
  %1697 = vxpose.xlu0.b32.cont [4/16] %v1633, 128
  %1698 = vxpose.xlu0.b32.cont [5/16] %v1634, 128
  %1699 = vxpose.xlu0.b32.cont [6/16] %v1635, 128
  %1700 = vxpose.xlu0.b32.cont [7/16] %v1636, 128
  %1701 = vxpose.xlu0.b32.cont [8/16] %v1637, 128
  %1702 = vxpose.xlu0.b32.cont [9/16] %v1638, 128
  %1703 = vxpose.xlu0.b32.cont [10/16] %v1639, 128
  %1704 = vxpose.xlu0.b32.cont [11/16] %v1640, 128
  %1705 = vxpose.xlu0.b32.cont [12/16] %v1641, 128
  %1706 = vxpose.xlu0.b32.cont [13/16] %v1642, 128
  %1707 = vxpose.xlu0.b32.cont [14/16] %v1643, 128
  %1708 = vxpose.xlu0.b32.cont [15/16] %v1644, 128
  %1709 = vxpose.xlu0.b32.end [16/16] %v1645, 128
  %v1710 = vpop.trf.xlu0
  %v1711 = vpop.trf.xlu0
  %v1712 = vpop.trf.xlu0
  %v1713 = vpop.trf.xlu0
  %v1714 = vpop.trf.xlu0
  %v1715 = vpop.trf.xlu0
  %v1716 = vpop.trf.xlu0
  %v1717 = vpop.trf.xlu0
  %v1718 = vpop.trf.xlu0
  %v1719 = vpop.trf.xlu0
  %v1720 = vpop.trf.xlu0
  %v1721 = vpop.trf.xlu0
  %v1722 = vpop.trf.xlu0
  %v1723 = vpop.trf.xlu0
  %v1724 = vpop.trf.xlu0
  %v1725 = vpop.trf.xlu0
  %1726 = vxpose.xlu0.b32.start [1/16] %v1646, 128
  %1727 = vxpose.xlu0.b32.cont [2/16] %v1647, 128
  %1728 = vxpose.xlu0.b32.cont [3/16] %v1648, 128
  %1729 = vxpose.xlu0.b32.cont [4/16] %v1649, 128
  %1730 = vxpose.xlu0.b32.cont [5/16] %v1650, 128
  %1731 = vxpose.xlu0.b32.cont [6/16] %v1651, 128
  %1732 = vxpose.xlu0.b32.cont [7/16] %v1652, 128
  %1733 = vxpose.xlu0.b32.cont [8/16] %v1653, 128
  %1734 = vxpose.xlu0.b32.cont [9/16] %v1654, 128
  %1735 = vxpose.xlu0.b32.cont [10/16] %v1655, 128
  %1736 = vxpose.xlu0.b32.cont [11/16] %v1656, 128
  %1737 = vxpose.xlu0.b32.cont [12/16] %v1657, 128
  %1738 = vxpose.xlu0.b32.cont [13/16] %v1658, 128
  %1739 = vxpose.xlu0.b32.cont [14/16] %v1659, 128
  %1740 = vxpose.xlu0.b32.cont [15/16] %v1660, 128
  %1741 = vxpose.xlu0.b32.end [16/16] %v1661, 128
  %v1742 = vpop.trf.xlu0
  %v1743 = vpop.trf.xlu0
  %v1744 = vpop.trf.xlu0
  %v1745 = vpop.trf.xlu0
  %v1746 = vpop.trf.xlu0
  %v1747 = vpop.trf.xlu0
  %v1748 = vpop.trf.xlu0
  %v1749 = vpop.trf.xlu0
  %v1750 = vpop.trf.xlu0
  %v1751 = vpop.trf.xlu0
  %v1752 = vpop.trf.xlu0
  %v1753 = vpop.trf.xlu0
  %v1754 = vpop.trf.xlu0
  %v1755 = vpop.trf.xlu0
  %v1756 = vpop.trf.xlu0
  %v1757 = vpop.trf.xlu0
  %1758 = vxpose.xlu0.b32.start [1/16] %v1662, 128
  %1759 = vxpose.xlu0.b32.cont [2/16] %v1663, 128
  %1760 = vxpose.xlu0.b32.cont [3/16] %v1664, 128
  %1761 = vxpose.xlu0.b32.cont [4/16] %v1665, 128
  %1762 = vxpose.xlu0.b32.cont [5/16] %v1666, 128
  %1763 = vxpose.xlu0.b32.cont [6/16] %v1667, 128
  %1764 = vxpose.xlu0.b32.cont [7/16] %v1668, 128
  %1765 = vxpose.xlu0.b32.cont [8/16] %v1669, 128
  %1766 = vxpose.xlu0.b32.cont [9/16] %v1670, 128
  %1767 = vxpose.xlu0.b32.cont [10/16] %v1671, 128
  %1768 = vxpose.xlu0.b32.cont [11/16] %v1672, 128
  %1769 = vxpose.xlu0.b32.cont [12/16] %v1673, 128
  %1770 = vxpose.xlu0.b32.cont [13/16] %v1674, 128
  %1771 = vxpose.xlu0.b32.cont [14/16] %v1675, 128
  %1772 = vxpose.xlu0.b32.cont [15/16] %v1676, 128
  %1773 = vxpose.xlu0.b32.end [16/16] %v1677, 128
  %v1774 = vpop.trf.xlu0
  %v1775 = vpop.trf.xlu0
  %v1776 = vpop.trf.xlu0
  %v1777 = vpop.trf.xlu0
  %v1778 = vpop.trf.xlu0
  %v1779 = vpop.trf.xlu0
  %v1780 = vpop.trf.xlu0
  %v1781 = vpop.trf.xlu0
  %v1782 = vpop.trf.xlu0
  %v1783 = vpop.trf.xlu0
  %v1784 = vpop.trf.xlu0
  %v1785 = vpop.trf.xlu0
  %v1786 = vpop.trf.xlu0
  %v1787 = vpop.trf.xlu0
  %v1788 = vpop.trf.xlu0
  %v1789 = vpop.trf.xlu0
  %1790 = vxpose.xlu0.b32.start [1/16] %v1678, 128
  %1791 = vxpose.xlu0.b32.cont [2/16] %v1679, 128
  %1792 = vxpose.xlu0.b32.cont [3/16] %v1680, 128
  %1793 = vxpose.xlu0.b32.cont [4/16] %v1681, 128
  %1794 = vxpose.xlu0.b32.cont [5/16] %v1682, 128
  %1795 = vxpose.xlu0.b32.cont [6/16] %v1683, 128
  %1796 = vxpose.xlu0.b32.cont [7/16] %v1684, 128
  %1797 = vxpose.xlu0.b32.cont [8/16] %v1685, 128
  %1798 = vxpose.xlu0.b32.cont [9/16] %v1686, 128
  %1799 = vxpose.xlu0.b32.cont [10/16] %v1687, 128
  %1800 = vxpose.xlu0.b32.cont [11/16] %v1688, 128
  %1801 = vxpose.xlu0.b32.cont [12/16] %v1689, 128
  %1802 = vxpose.xlu0.b32.cont [13/16] %v1690, 128
  %1803 = vxpose.xlu0.b32.cont [14/16] %v1691, 128
  %1804 = vxpose.xlu0.b32.cont [15/16] %v1692, 128
  %1805 = vxpose.xlu0.b32.end [16/16] %v1693, 128
  %v1806 = vpop.trf.xlu0
  %v1807 = vpop.trf.xlu0
  %v1808 = vpop.trf.xlu0
  %v1809 = vpop.trf.xlu0
  %v1810 = vpop.trf.xlu0
  %v1811 = vpop.trf.xlu0
  %v1812 = vpop.trf.xlu0
  %v1813 = vpop.trf.xlu0
  %v1814 = vpop.trf.xlu0
  %v1815 = vpop.trf.xlu0
  %v1816 = vpop.trf.xlu0
  %v1817 = vpop.trf.xlu0
  %v1818 = vpop.trf.xlu0
  %v1819 = vpop.trf.xlu0
  %v1820 = vpop.trf.xlu0
  %v1821 = vpop.trf.xlu0
  %v1822 = vadd.f32 %v1710, %v1711
  %v1823 = vadd.f32 %v1822, %v1712
  %v1824 = vadd.f32 %v1823, %v1713
  %v1825 = vrot.slane %v1824, 4
  %v1826 = vadd.f32 %v1824, %v1825
  %v1827 = vrot.slane %v1826, 2
  %v1828 = vadd.f32 %v1826, %v1827
  %v1829 = vrot.slane %v1828, 1
  %v1830 = vadd.f32 %v1828, %v1829
  %v1831 = vadd.f32 %v1742, %v1743
  %v1832 = vadd.f32 %v1831, %v1744
  %v1833 = vadd.f32 %v1832, %v1745
  %v1834 = vrot.slane %v1833, 4
  %v1835 = vadd.f32 %v1833, %v1834
  %v1836 = vrot.slane %v1835, 2
  %v1837 = vadd.f32 %v1835, %v1836
  %v1838 = vrot.slane %v1837, 1
  %v1839 = vadd.f32 %v1837, %v1838
  %v1840 = vadd.f32 %v1774, %v1775
  %v1841 = vadd.f32 %v1840, %v1776
  %v1842 = vadd.f32 %v1841, %v1777
  %v1843 = vrot.slane %v1842, 4
  %v1844 = vadd.f32 %v1842, %v1843
  %v1845 = vrot.slane %v1844, 2
  %v1846 = vadd.f32 %v1844, %v1845
  %v1847 = vrot.slane %v1846, 1
  %v1848 = vadd.f32 %v1846, %v1847
  %v1849 = vadd.f32 %v1806, %v1807
  %v1850 = vadd.f32 %v1849, %v1808
  %v1851 = vadd.f32 %v1850, %v1809
  %v1852 = vrot.slane %v1851, 4
  %v1853 = vadd.f32 %v1851, %v1852
  %v1854 = vrot.slane %v1853, 2
  %v1855 = vadd.f32 %v1853, %v1854
  %v1856 = vrot.slane %v1855, 1
  %v1857 = vadd.f32 %v1855, %v1856
  %v1858 = vld [vmem:[%s4 + $0x4] sm:$0x1]
  %1860 = vset.pattern.permute.xlu0 0
  %1861 = vperm.xlu0 %1860, %v1858
  %v1862 = vpop.permute.xlu0 %1861
  %v1864 = vadd.f32 %v1830, %v1862
  %v1865 = vadd.f32 %v1839, %v1862
  %v1866 = vadd.f32 %v1848, %v1862
  %v1867 = vadd.f32 %v1857, %v1862
  %v1872 = vcombine.low %v1864, %v1865
  %v1873 = vcombine.low %v1866, %v1867
  %v1875 = vunpack.c.l.s4 1966171168
  %v1876 = vunpack.c.0.s8 %v1875
  %v1877 = vlaneseq
  %v1878 = vshrl.u32 %v1877, 7
  %v1879 = vsub.s32 %v1876, %v1878
  %v1880 = vrot.slane %v1872, %v1879
  %v1882 = vunpack.c.l.s4 1966171168
  %v1883 = vunpack.c.0.s8 %v1882
  %v1884 = vlaneseq
  %v1885 = vshrl.u32 %v1884, 7
  %v1886 = vsub.s32 %v1883, %v1885
  %v1887 = vrot.slane %v1873, %v1886
  %v1888 = vcombine.low %v1880, %v1887
  %v1890 = vunpack.c.l.s4 1966171168
  %v1891 = vunpack.c.0.s8 %v1890
  %v1892 = vlaneseq
  %v1893 = vshrl.u32 %v1892, 7
  %v1894 = vsub.s32 %v1891, %v1893
  %v1895 = vrot.slane %v1888, %v1894
  %v1897 = vlaneseq
  %vm1898 = vcmp.ge.s32.totalorder %v1897, 0
  %vm1899 = vcmp.lt.s32.totalorder %v1897, 512
  %vm1900 = vmand %vm1898, %vm1899
  %1901 = vst.msk [vmem:[%s5] sm:$0xf] %vm1900, %v1895
  // Predicated region
  $region22: #{dense_nn_3layers.1} parent=0 // pred_check
    _
  $region23: #{dense_nn_3layers.1} parent=0 // pred_check_branch
    %1903 = sbr.rel (0) target = $region25
  $region24: #{dense_nn_3layers.1} parent=0 // pred_region
    _
  $region25: #{dense_nn_3layers.1} parent=0 // pred_fallthru
    _
  // Predicated region
  $region26: #{dense_nn_3layers.1} parent=0 // pred_check
    _
  $region27: #{dense_nn_3layers.1} parent=0 // pred_check_branch
    %1905 = sbr.rel (0) target = $region29
  $region28: #{dense_nn_3layers.1} parent=0 // pred_region
    _
  $region29: #{dense_nn_3layers.1} parent=0 // pred_fallthru
    _

</llo_original>
